<compile_context>
chip_gen: v7x
topology: tpu7x:2x2x1
jax: 0.10.0
libtpu: 0.0.40
codegen_flags: <defaults>
</compile_context>

<pallas_src>
import jax
import jax.numpy as jnp
from jax.experimental import pallas as pl
from jax.experimental.pallas import tpu as pltpu

_LANE = 128
_SUBLANE_BF16 = 16  # bf16 packs 2 rows per sublane -> keep row tiles % 16 == 0


def _round_up(x, m):
    return (x + m - 1) // m * m


def _const_index(i):
    # Constant block index: parameter DMA'd once, resident across grid steps.
    return (0, 0)


def _vmem_capacity_bytes():
    try:
        return int(pltpu.get_tpu_info().vmem_capacity_bytes)
    except Exception:
        return 128 << 20  # conservative default (v5e/v6e)


def _qn_kernel(x_ref,
               w1_ref, b1_ref,
               w2_ref, b2_ref,
               w3_ref, b3_ref,
               w4_ref, b4_ref,
               w5_ref, b5_ref,
               o_ref):
    """Fused 5-layer MLP: bf16 matmuls on the MXU, f32 accum + bias + ReLU."""

    def layer(h_bf16, w_ref, b_ref, relu):
        acc = jnp.dot(h_bf16, w_ref[...], preferred_element_type=jnp.float32)
        acc = acc + b_ref[...]          # bias add in f32
        if relu:
            acc = jnp.maximum(acc, 0.0)  # ReLU in f32 (v5e VPU has no bf16)
        return acc

    h = x_ref[...]                                         # bf16 activations in
    h = layer(h, w1_ref, b1_ref, True).astype(jnp.bfloat16)
    h = layer(h, w2_ref, b2_ref, True).astype(jnp.bfloat16)
    h = layer(h, w3_ref, b3_ref, True).astype(jnp.bfloat16)
    h = layer(h, w4_ref, b4_ref, True).astype(jnp.bfloat16)
    y = layer(h, w5_ref, b5_ref, False)                    # final layer, no ReLU

    o_ref[...] = y.astype(o_ref.dtype)                     # lane-dense (TB,128) store


def qn_forward(x, params, *, block_b=None, out_dtype=jnp.bfloat16):
    """QN forward via one Pallas kernel.

    x: (B, state_number) float32.
    params: list of 5 (W, b) pairs, W stored as (in, out) = torch weight.T.
    Returns (B, action_number) float32.
    """
    B, state_number = x.shape
    action_number = params[-1][0].shape[1]
    dims = [state_number] + [w.shape[1] for (w, _) in params]

    # ---- batch tiling: batch is a (parallel) grid axis ----------------------
    # Big tiles amortize the ~0.35us per-grid-step overhead; when the batch is
    # large enough, split into >= 2 steps so v7x's two TensorCores both work.
    MAX_TILE = 512
    MIN_SPLIT = 256
    if block_b is None:
        if B >= MIN_SPLIT:
            block_b = min(MAX_TILE, _round_up((B + 1) // 2, _SUBLANE_BF16))
        else:
            block_b = _round_up(max(B, 1), _SUBLANE_BF16)
    block_b = max(_SUBLANE_BF16, _round_up(block_b, _SUBLANE_BF16))
    b_pad = _round_up(max(B, 1), block_b)
    grid = (b_pad // block_b,)

    # ---- lane-dense output: pad out features to a full 128-lane register ----
    out_pad = _round_up(action_number, _LANE)
    out_itemsize = jnp.dtype(out_dtype).itemsize

    x_p = x if b_pad == B else jnp.pad(x, ((0, b_pad - B), (0, 0)))
    x_bf = x_p.astype(jnp.bfloat16)

    flat_args = [x_bf]
    last = len(params) - 1
    for li, (w, b) in enumerate(params):
        if li == last and out_pad != action_number:
            w = jnp.pad(w, ((0, 0), (0, out_pad - action_number)))
            b = jnp.pad(b, (0, out_pad - action_number))
        flat_args.append(w.astype(jnp.bfloat16))                 # bf16 weights
        flat_args.append(b.reshape(1, -1).astype(jnp.float32))   # f32 biases

    # ---- cost estimate (padded last layer + output bytes included) ----------
    dims_pad = dims[:-1] + [out_pad]
    flops_per_row = 2 * sum(dims_pad[i] * dims_pad[i + 1] for i in range(len(params)))
    bytes_params = sum(int(a.size) * a.dtype.itemsize for a in flat_args[1:])
    bytes_io = int(x_bf.size) * 2 + b_pad * out_pad * out_itemsize
    cost = pl.CostEstimate(flops=flops_per_row * b_pad,
                           transcendentals=0,
                           bytes_accessed=bytes_params + bytes_io)

    # ---- generation-aware VMEM budget guard ----------------------------------
    def _vmem_limit(weight_buffers):
        resident = weight_buffers * bytes_params                   # resident params
        resident += 2 * block_b * state_number * 2                 # x tile (double-buf, bf16)
        resident += 2 * block_b * out_pad * out_itemsize           # out tile (double-buf)
        resident += 4 * block_b * max(dims_pad) * 4                # f32 intermediates
        if resident <= (12 << 20):
            return None                                            # default scoped limit ok
        cap = _vmem_capacity_bytes() * 3 // 4                      # ~48MiB v7x, ~96MiB v5e/v6e
        return int(min(resident * 3 // 2, cap))

    # ---- BlockSpecs + pallas_call builder ------------------------------------
    # x / out: tiled along batch.  Weights & biases: whole-array blocks with a
    # constant index_map (DMA'd once), requested single-buffered.
    def _build(single_buffer_params):
        param_kw = {"pipeline_mode": pl.Buffered(1)} if single_buffer_params else {}
        in_specs = [pl.BlockSpec((block_b, state_number), lambda i: (i, 0))]
        for a in flat_args[1:]:
            in_specs.append(pl.BlockSpec(a.shape, _const_index, **param_kw))
        out_spec = pl.BlockSpec((block_b, out_pad), lambda i: (i, 0))
        compiler_params = pltpu.CompilerParams(
            dimension_semantics=("parallel",),
            vmem_limit_bytes=_vmem_limit(1 if single_buffer_params else 2),
        )
        return pl.pallas_call(
            _qn_kernel,
            out_shape=jax.ShapeDtypeStruct((b_pad, out_pad), out_dtype),
            grid=grid,
            in_specs=in_specs,
            out_specs=out_spec,
            compiler_params=compiler_params,
            cost_estimate=cost,
        )

    try:
        out_padded = _build(True)(*flat_args)
    except Exception:
        # Fallback if this jax build rejects Buffered(1) on constant blocks.
        out_padded = _build(False)(*flat_args)

    # TODO(synk): add a K-tiled (reduction grid axis marked 'arbitrary', f32 VMEM
    # accumulator) path for fc3/fc4 once the bf16 weight set exceeds ~24 MiB
    # (hidlyr_nodes >= ~512) so W4 need not be whole-array resident on v7x.

    return out_padded[:B, :action_number].astype(x.dtype)


def init_qn_params(key, state_number, hidlyr_nodes, action_number):
    """Deterministic init mimicking PyTorch nn.Linear default (uniform +-1/sqrt(fan_in))."""
    dims = [state_number,
            hidlyr_nodes,
            hidlyr_nodes * 2,
            hidlyr_nodes * 4,
            hidlyr_nodes * 8,
            action_number]
    params = []
    for i in range(5):
        fan_in, fan_out = dims[i], dims[i + 1]
        key, kw, kb = jax.random.split(key, 3)
        bound = 1.0 / jnp.sqrt(fan_in)
        w = jax.random.uniform(kw, (fan_in, fan_out), jnp.float32, -bound, bound)
        b = jax.random.uniform(kb, (fan_out,), jnp.float32, -bound, bound)
        params.append((w, b))
    return params


def qn_reference(x, params, *, bf16=True):
    """Plain-JAX reference matching the PyTorch forward (optionally mirroring
    the kernel's bf16-matmul / f32-accumulate numerics)."""
    h = x
    n = len(params)
    for i, (w, b) in enumerate(params):
        if bf16:
            h = h.astype(jnp.bfloat16)
            w = w.astype(jnp.bfloat16)
        h = jnp.dot(h, w, preferred_element_type=jnp.float32) + b.astype(jnp.float32)
        if i < n - 1:
            h = jnp.maximum(h, 0.0)
    return h


if __name__ == "__main__":
    state_number = 8
    hidlyr_nodes = 32
    action_number = 4
    batch = 2

    key = jax.random.PRNGKey(0)
    key, kx = jax.random.split(key)
    x = jax.random.normal(kx, (batch, state_number), jnp.float32)

    params = init_qn_params(key, state_number, hidlyr_nodes, action_number)

    out = qn_forward(x, params)
    out = jax.block_until_ready(out)

    ref_bf16 = qn_reference(x, params, bf16=True)   # same matmul numerics as kernel
    ref_f32 = qn_reference(x, params, bf16=False)   # exact PyTorch-equivalent math

    assert out.shape == (batch, action_number)
    assert jnp.allclose(out, ref_bf16, atol=1e-2, rtol=1e-2), "mismatch vs bf16 reference"
    assert jnp.allclose(out, ref_f32, atol=5e-2, rtol=5e-2), "mismatch vs f32 reference"

    print("KERNEL_OK")
</pallas_src>

<mosaic_0001>
module attributes {stable_mosaic.version = 11 : i64} {
  func.func @_qn_kernel(%arg0: i32, %arg1: memref<16x8xbf16, #tpu.memory_space<vmem>>, %arg2: memref<8x32xbf16, #tpu.memory_space<vmem>>, %arg3: memref<1x32xf32, #tpu.memory_space<vmem>>, %arg4: memref<32x64xbf16, #tpu.memory_space<vmem>>, %arg5: memref<1x64xf32, #tpu.memory_space<vmem>>, %arg6: memref<64x128xbf16, #tpu.memory_space<vmem>>, %arg7: memref<1x128xf32, #tpu.memory_space<vmem>>, %arg8: memref<128x256xbf16, #tpu.memory_space<vmem>>, %arg9: memref<1x256xf32, #tpu.memory_space<vmem>>, %arg10: memref<256x128xbf16, #tpu.memory_space<vmem>>, %arg11: memref<1x128xf32, #tpu.memory_space<vmem>>, %arg12: memref<16x128xbf16, #tpu.memory_space<vmem>>) attributes {dimension_semantics = [#tpu.dimension_semantics<parallel>], iteration_bounds = array<i64: 1>, scalar_prefetch = 0 : i64, scratch_operands = 0 : i64, tpu.core_type = #tpu.core_type<tc>, window_params = [{transform_indices = @transform_0, window_bounds = array<i64: 16, 8>}, {pipeline_mode = #tpu.pipeline_mode<synchronous>, transform_indices = @transform_1, window_bounds = array<i64: 8, 32>}, {pipeline_mode = #tpu.pipeline_mode<synchronous>, transform_indices = @transform_2, window_bounds = array<i64: 1, 32>}, {pipeline_mode = #tpu.pipeline_mode<synchronous>, transform_indices = @transform_3, window_bounds = array<i64: 32, 64>}, {pipeline_mode = #tpu.pipeline_mode<synchronous>, transform_indices = @transform_4, window_bounds = array<i64: 1, 64>}, {pipeline_mode = #tpu.pipeline_mode<synchronous>, transform_indices = @transform_5, window_bounds = array<i64: 64, 128>}, {pipeline_mode = #tpu.pipeline_mode<synchronous>, transform_indices = @transform_6, window_bounds = array<i64: 1, 128>}, {pipeline_mode = #tpu.pipeline_mode<synchronous>, transform_indices = @transform_7, window_bounds = array<i64: 128, 256>}, {pipeline_mode = #tpu.pipeline_mode<synchronous>, transform_indices = @transform_8, window_bounds = array<i64: 1, 256>}, {pipeline_mode = #tpu.pipeline_mode<synchronous>, transform_indices = @transform_9, window_bounds = array<i64: 256, 128>}, {pipeline_mode = #tpu.pipeline_mode<synchronous>, transform_indices = @transform_10, window_bounds = array<i64: 1, 128>}, {transform_indices = @transform_11, window_bounds = array<i64: 16, 128>}]} {
    %c0 = arith.constant 0 : index
    %c0_0 = arith.constant 0 : index
    %0 = vector.load %arg1[%c0, %c0_0] : memref<16x8xbf16, #tpu.memory_space<vmem>>, vector<16x8xbf16>
    %c0_1 = arith.constant 0 : index
    %c0_2 = arith.constant 0 : index
    %1 = vector.load %arg2[%c0_1, %c0_2] : memref<8x32xbf16, #tpu.memory_space<vmem>>, vector<8x32xbf16>
    %cst = arith.constant dense<0.000000e+00> : vector<16x32xf32>
    %2 = tpu.matmul %0, %1, %cst {dimension_numbers = #tpu.dot_dimension_numbers<[1], [0], [0], [1], [0, 0, 1, 1], [], []>} : vector<16x8xbf16>, vector<8x32xbf16>, vector<16x32xf32> -> vector<16x32xf32>
    %c0_3 = arith.constant 0 : index
    %c0_4 = arith.constant 0 : index
    %3 = vector.load %arg3[%c0_3, %c0_4] : memref<1x32xf32, #tpu.memory_space<vmem>>, vector<1x32xf32>
    %4 = vector.broadcast %3 : vector<1x32xf32> to vector<16x32xf32>
    %5 = arith.addf %2, %4 : vector<16x32xf32>
    %cst_5 = arith.constant 0.000000e+00 : f32
    %6 = vector.broadcast %cst_5 : f32 to vector<16x32xf32>
    %7 = arith.maximumf %5, %6 : vector<16x32xf32>
    %8 = arith.truncf %7 : vector<16x32xf32> to vector<16x32xbf16>
    %c0_6 = arith.constant 0 : index
    %c0_7 = arith.constant 0 : index
    %9 = vector.load %arg4[%c0_6, %c0_7] : memref<32x64xbf16, #tpu.memory_space<vmem>>, vector<32x64xbf16>
    %cst_8 = arith.constant dense<0.000000e+00> : vector<16x64xf32>
    %10 = tpu.matmul %8, %9, %cst_8 {dimension_numbers = #tpu.dot_dimension_numbers<[1], [0], [0], [1], [0, 0, 1, 1], [], []>} : vector<16x32xbf16>, vector<32x64xbf16>, vector<16x64xf32> -> vector<16x64xf32>
    %c0_9 = arith.constant 0 : index
    %c0_10 = arith.constant 0 : index
    %11 = vector.load %arg5[%c0_9, %c0_10] : memref<1x64xf32, #tpu.memory_space<vmem>>, vector<1x64xf32>
    %12 = vector.broadcast %11 : vector<1x64xf32> to vector<16x64xf32>
    %13 = arith.addf %10, %12 : vector<16x64xf32>
    %cst_11 = arith.constant 0.000000e+00 : f32
    %14 = vector.broadcast %cst_11 : f32 to vector<16x64xf32>
    %15 = arith.maximumf %13, %14 : vector<16x64xf32>
    %16 = arith.truncf %15 : vector<16x64xf32> to vector<16x64xbf16>
    %c0_12 = arith.constant 0 : index
    %c0_13 = arith.constant 0 : index
    %17 = vector.load %arg6[%c0_12, %c0_13] : memref<64x128xbf16, #tpu.memory_space<vmem>>, vector<64x128xbf16>
    %cst_14 = arith.constant dense<0.000000e+00> : vector<16x128xf32>
    %18 = tpu.matmul %16, %17, %cst_14 {dimension_numbers = #tpu.dot_dimension_numbers<[1], [0], [0], [1], [0, 0, 1, 1], [], []>} : vector<16x64xbf16>, vector<64x128xbf16>, vector<16x128xf32> -> vector<16x128xf32>
    %c0_15 = arith.constant 0 : index
    %c0_16 = arith.constant 0 : index
    %19 = vector.load %arg7[%c0_15, %c0_16] : memref<1x128xf32, #tpu.memory_space<vmem>>, vector<1x128xf32>
    %20 = vector.broadcast %19 : vector<1x128xf32> to vector<16x128xf32>
    %21 = arith.addf %18, %20 : vector<16x128xf32>
    %cst_17 = arith.constant 0.000000e+00 : f32
    %22 = vector.broadcast %cst_17 : f32 to vector<16x128xf32>
    %23 = arith.maximumf %21, %22 : vector<16x128xf32>
    %24 = arith.truncf %23 : vector<16x128xf32> to vector<16x128xbf16>
    %c0_18 = arith.constant 0 : index
    %c0_19 = arith.constant 0 : index
    %25 = vector.load %arg8[%c0_18, %c0_19] : memref<128x256xbf16, #tpu.memory_space<vmem>>, vector<128x256xbf16>
    %cst_20 = arith.constant dense<0.000000e+00> : vector<16x256xf32>
    %26 = tpu.matmul %24, %25, %cst_20 {dimension_numbers = #tpu.dot_dimension_numbers<[1], [0], [0], [1], [0, 0, 1, 1], [], []>} : vector<16x128xbf16>, vector<128x256xbf16>, vector<16x256xf32> -> vector<16x256xf32>
    %c0_21 = arith.constant 0 : index
    %c0_22 = arith.constant 0 : index
    %27 = vector.load %arg9[%c0_21, %c0_22] : memref<1x256xf32, #tpu.memory_space<vmem>>, vector<1x256xf32>
    %28 = vector.broadcast %27 : vector<1x256xf32> to vector<16x256xf32>
    %29 = arith.addf %26, %28 : vector<16x256xf32>
    %cst_23 = arith.constant 0.000000e+00 : f32
    %30 = vector.broadcast %cst_23 : f32 to vector<16x256xf32>
    %31 = arith.maximumf %29, %30 : vector<16x256xf32>
    %32 = arith.truncf %31 : vector<16x256xf32> to vector<16x256xbf16>
    %c0_24 = arith.constant 0 : index
    %c0_25 = arith.constant 0 : index
    %33 = vector.load %arg10[%c0_24, %c0_25] : memref<256x128xbf16, #tpu.memory_space<vmem>>, vector<256x128xbf16>
    %cst_26 = arith.constant dense<0.000000e+00> : vector<16x128xf32>
    %34 = tpu.matmul %32, %33, %cst_26 {dimension_numbers = #tpu.dot_dimension_numbers<[1], [0], [0], [1], [0, 0, 1, 1], [], []>} : vector<16x256xbf16>, vector<256x128xbf16>, vector<16x128xf32> -> vector<16x128xf32>
    %c0_27 = arith.constant 0 : index
    %c0_28 = arith.constant 0 : index
    %35 = vector.load %arg11[%c0_27, %c0_28] : memref<1x128xf32, #tpu.memory_space<vmem>>, vector<1x128xf32>
    %36 = vector.broadcast %35 : vector<1x128xf32> to vector<16x128xf32>
    %37 = arith.addf %34, %36 : vector<16x128xf32>
    %38 = arith.truncf %37 : vector<16x128xf32> to vector<16x128xbf16>
    %c0_29 = arith.constant 0 : index
    %c0_30 = arith.constant 0 : index
    %39 = vector.load %arg12[%c0_29, %c0_30] : memref<16x128xbf16, #tpu.memory_space<vmem>>, vector<16x128xbf16>
    tpu.vector_store %arg12[%c0_29, %c0_30], %38 {strides = array<i32>} : memref<16x128xbf16, #tpu.memory_space<vmem>>, vector<16x128xbf16>,
    return
  }
  func.func @transform_0(%arg0: i32) -> (i32, i32) {
    %c0_i32 = arith.constant 0 : i32
    %c0_i32_0 = arith.constant 0 : i32
    return %arg0, %c0_i32 : i32, i32
  }
  func.func @transform_1(%arg0: i32) -> (i32, i32) {
    %c0_i32 = arith.constant 0 : i32
    %c0_i32_0 = arith.constant 0 : i32
    %c0_i32_1 = arith.constant 0 : i32
    return %c0_i32, %c0_i32_0 : i32, i32
  }
  func.func @transform_2(%arg0: i32) -> (i32, i32) {
    %c0_i32 = arith.constant 0 : i32
    %c0_i32_0 = arith.constant 0 : i32
    %c0_i32_1 = arith.constant 0 : i32
    return %c0_i32, %c0_i32_0 : i32, i32
  }
  func.func @transform_3(%arg0: i32) -> (i32, i32) {
    %c0_i32 = arith.constant 0 : i32
    %c0_i32_0 = arith.constant 0 : i32
    %c0_i32_1 = arith.constant 0 : i32
    return %c0_i32, %c0_i32_0 : i32, i32
  }
  func.func @transform_4(%arg0: i32) -> (i32, i32) {
    %c0_i32 = arith.constant 0 : i32
    %c0_i32_0 = arith.constant 0 : i32
    %c0_i32_1 = arith.constant 0 : i32
    return %c0_i32, %c0_i32_0 : i32, i32
  }
  func.func @transform_5(%arg0: i32) -> (i32, i32) {
    %c0_i32 = arith.constant 0 : i32
    %c0_i32_0 = arith.constant 0 : i32
    %c0_i32_1 = arith.constant 0 : i32
    return %c0_i32, %c0_i32_0 : i32, i32
  }
  func.func @transform_6(%arg0: i32) -> (i32, i32) {
    %c0_i32 = arith.constant 0 : i32
    %c0_i32_0 = arith.constant 0 : i32
    %c0_i32_1 = arith.constant 0 : i32
    return %c0_i32, %c0_i32_0 : i32, i32
  }
  func.func @transform_7(%arg0: i32) -> (i32, i32) {
    %c0_i32 = arith.constant 0 : i32
    %c0_i32_0 = arith.constant 0 : i32
    %c0_i32_1 = arith.constant 0 : i32
    return %c0_i32, %c0_i32_0 : i32, i32
  }
  func.func @transform_8(%arg0: i32) -> (i32, i32) {
    %c0_i32 = arith.constant 0 : i32
    %c0_i32_0 = arith.constant 0 : i32
    %c0_i32_1 = arith.constant 0 : i32
    return %c0_i32, %c0_i32_0 : i32, i32
  }
  func.func @transform_9(%arg0: i32) -> (i32, i32) {
    %c0_i32 = arith.constant 0 : i32
    %c0_i32_0 = arith.constant 0 : i32
    %c0_i32_1 = arith.constant 0 : i32
    return %c0_i32, %c0_i32_0 : i32, i32
  }
  func.func @transform_10(%arg0: i32) -> (i32, i32) {
    %c0_i32 = arith.constant 0 : i32
    %c0_i32_0 = arith.constant 0 : i32
    %c0_i32_1 = arith.constant 0 : i32
    return %c0_i32, %c0_i32_0 : i32, i32
  }
  func.func @transform_11(%arg0: i32) -> (i32, i32) {
    %c0_i32 = arith.constant 0 : i32
    %c0_i32_0 = arith.constant 0 : i32
    return %arg0, %c0_i32 : i32, i32
  }
}

module attributes {stable_mosaic.version = 11 : i64} {
  func.func @_qn_kernel(%arg0: i32, %arg1: memref<16x8xbf16, #tpu.memory_space<vmem>>, %arg2: memref<8x32xbf16, #tpu.memory_space<vmem>>, %arg3: memref<1x32xf32, #tpu.memory_space<vmem>>, %arg4: memref<32x64xbf16, #tpu.memory_space<vmem>>, %arg5: memref<1x64xf32, #tpu.memory_space<vmem>>, %arg6: memref<64x128xbf16, #tpu.memory_space<vmem>>, %arg7: memref<1x128xf32, #tpu.memory_space<vmem>>, %arg8: memref<128x256xbf16, #tpu.memory_space<vmem>>, %arg9: memref<1x256xf32, #tpu.memory_space<vmem>>, %arg10: memref<256x128xbf16, #tpu.memory_space<vmem>>, %arg11: memref<1x128xf32, #tpu.memory_space<vmem>>, %arg12: memref<16x128xbf16, #tpu.memory_space<vmem>>) attributes {dimension_semantics = [#tpu.dimension_semantics<parallel>], iteration_bounds = array<i64: 1>, scalar_prefetch = 0 : i64, scratch_operands = 0 : i64, tpu.core_type = #tpu.core_type<tc>, window_params = [{transform_indices = @transform_0, window_bounds = array<i64: 16, 8>}, {pipeline_mode = #tpu.pipeline_mode<synchronous>, transform_indices = @transform_1, window_bounds = array<i64: 8, 32>}, {pipeline_mode = #tpu.pipeline_mode<synchronous>, transform_indices = @transform_2, window_bounds = array<i64: 1, 32>}, {pipeline_mode = #tpu.pipeline_mode<synchronous>, transform_indices = @transform_3, window_bounds = array<i64: 32, 64>}, {pipeline_mode = #tpu.pipeline_mode<synchronous>, transform_indices = @transform_4, window_bounds = array<i64: 1, 64>}, {pipeline_mode = #tpu.pipeline_mode<synchronous>, transform_indices = @transform_5, window_bounds = array<i64: 64, 128>}, {pipeline_mode = #tpu.pipeline_mode<synchronous>, transform_indices = @transform_6, window_bounds = array<i64: 1, 128>}, {pipeline_mode = #tpu.pipeline_mode<synchronous>, transform_indices = @transform_7, window_bounds = array<i64: 128, 256>}, {pipeline_mode = #tpu.pipeline_mode<synchronous>, transform_indices = @transform_8, window_bounds = array<i64: 1, 256>}, {pipeline_mode = #tpu.pipeline_mode<synchronous>, transform_indices = @transform_9, window_bounds = array<i64: 256, 128>}, {pipeline_mode = #tpu.pipeline_mode<synchronous>, transform_indices = @transform_10, window_bounds = array<i64: 1, 128>}, {transform_indices = @transform_11, window_bounds = array<i64: 16, 128>}]} {
    %c0 = arith.constant 0 : index
    %c0_0 = arith.constant 0 : index
    %0 = vector.load %arg1[%c0, %c0_0] : memref<16x8xbf16, #tpu.memory_space<vmem>>, vector<16x8xbf16>
    %c0_1 = arith.constant 0 : index
    %c0_2 = arith.constant 0 : index
    %1 = vector.load %arg2[%c0_1, %c0_2] : memref<8x32xbf16, #tpu.memory_space<vmem>>, vector<8x32xbf16>
    %cst = arith.constant dense<0.000000e+00> : vector<16x32xf32>
    %2 = tpu.matmul %0, %1, %cst {dimension_numbers = #tpu.dot_dimension_numbers<[1], [0], [0], [1], [0, 0, 1, 1], [], []>} : vector<16x8xbf16>, vector<8x32xbf16>, vector<16x32xf32> -> vector<16x32xf32>
    %c0_3 = arith.constant 0 : index
    %c0_4 = arith.constant 0 : index
    %3 = vector.load %arg3[%c0_3, %c0_4] : memref<1x32xf32, #tpu.memory_space<vmem>>, vector<1x32xf32>
    %4 = vector.broadcast %3 : vector<1x32xf32> to vector<16x32xf32>
    %5 = arith.addf %2, %4 : vector<16x32xf32>
    %cst_5 = arith.constant 0.000000e+00 : f32
    %6 = vector.broadcast %cst_5 : f32 to vector<16x32xf32>
    %7 = arith.maximumf %5, %6 : vector<16x32xf32>
    %8 = arith.truncf %7 : vector<16x32xf32> to vector<16x32xbf16>
    %c0_6 = arith.constant 0 : index
    %c0_7 = arith.constant 0 : index
    %9 = vector.load %arg4[%c0_6, %c0_7] : memref<32x64xbf16, #tpu.memory_space<vmem>>, vector<32x64xbf16>
    %cst_8 = arith.constant dense<0.000000e+00> : vector<16x64xf32>
    %10 = tpu.matmul %8, %9, %cst_8 {dimension_numbers = #tpu.dot_dimension_numbers<[1], [0], [0], [1], [0, 0, 1, 1], [], []>} : vector<16x32xbf16>, vector<32x64xbf16>, vector<16x64xf32> -> vector<16x64xf32>
    %c0_9 = arith.constant 0 : index
    %c0_10 = arith.constant 0 : index
    %11 = vector.load %arg5[%c0_9, %c0_10] : memref<1x64xf32, #tpu.memory_space<vmem>>, vector<1x64xf32>
    %12 = vector.broadcast %11 : vector<1x64xf32> to vector<16x64xf32>
    %13 = arith.addf %10, %12 : vector<16x64xf32>
    %cst_11 = arith.constant 0.000000e+00 : f32
    %14 = vector.broadcast %cst_11 : f32 to vector<16x64xf32>
    %15 = arith.maximumf %13, %14 : vector<16x64xf32>
    %16 = arith.truncf %15 : vector<16x64xf32> to vector<16x64xbf16>
    %c0_12 = arith.constant 0 : index
    %c0_13 = arith.constant 0 : index
    %17 = vector.load %arg6[%c0_12, %c0_13] : memref<64x128xbf16, #tpu.memory_space<vmem>>, vector<64x128xbf16>
    %cst_14 = arith.constant dense<0.000000e+00> : vector<16x128xf32>
    %18 = tpu.matmul %16, %17, %cst_14 {dimension_numbers = #tpu.dot_dimension_numbers<[1], [0], [0], [1], [0, 0, 1, 1], [], []>} : vector<16x64xbf16>, vector<64x128xbf16>, vector<16x128xf32> -> vector<16x128xf32>
    %c0_15 = arith.constant 0 : index
    %c0_16 = arith.constant 0 : index
    %19 = vector.load %arg7[%c0_15, %c0_16] : memref<1x128xf32, #tpu.memory_space<vmem>>, vector<1x128xf32>
    %20 = vector.broadcast %19 : vector<1x128xf32> to vector<16x128xf32>
    %21 = arith.addf %18, %20 : vector<16x128xf32>
    %cst_17 = arith.constant 0.000000e+00 : f32
    %22 = vector.broadcast %cst_17 : f32 to vector<16x128xf32>
    %23 = arith.maximumf %21, %22 : vector<16x128xf32>
    %24 = arith.truncf %23 : vector<16x128xf32> to vector<16x128xbf16>
    %c0_18 = arith.constant 0 : index
    %c0_19 = arith.constant 0 : index
    %25 = vector.load %arg8[%c0_18, %c0_19] : memref<128x256xbf16, #tpu.memory_space<vmem>>, vector<128x256xbf16>
    %cst_20 = arith.constant dense<0.000000e+00> : vector<16x256xf32>
    %26 = tpu.matmul %24, %25, %cst_20 {dimension_numbers = #tpu.dot_dimension_numbers<[1], [0], [0], [1], [0, 0, 1, 1], [], []>} : vector<16x128xbf16>, vector<128x256xbf16>, vector<16x256xf32> -> vector<16x256xf32>
    %c0_21 = arith.constant 0 : index
    %c0_22 = arith.constant 0 : index
    %27 = vector.load %arg9[%c0_21, %c0_22] : memref<1x256xf32, #tpu.memory_space<vmem>>, vector<1x256xf32>
    %28 = vector.broadcast %27 : vector<1x256xf32> to vector<16x256xf32>
    %29 = arith.addf %26, %28 : vector<16x256xf32>
    %cst_23 = arith.constant 0.000000e+00 : f32
    %30 = vector.broadcast %cst_23 : f32 to vector<16x256xf32>
    %31 = arith.maximumf %29, %30 : vector<16x256xf32>
    %32 = arith.truncf %31 : vector<16x256xf32> to vector<16x256xbf16>
    %c0_24 = arith.constant 0 : index
    %c0_25 = arith.constant 0 : index
    %33 = vector.load %arg10[%c0_24, %c0_25] : memref<256x128xbf16, #tpu.memory_space<vmem>>, vector<256x128xbf16>
    %cst_26 = arith.constant dense<0.000000e+00> : vector<16x128xf32>
    %34 = tpu.matmul %32, %33, %cst_26 {dimension_numbers = #tpu.dot_dimension_numbers<[1], [0], [0], [1], [0, 0, 1, 1], [], []>} : vector<16x256xbf16>, vector<256x128xbf16>, vector<16x128xf32> -> vector<16x128xf32>
    %c0_27 = arith.constant 0 : index
    %c0_28 = arith.constant 0 : index
    %35 = vector.load %arg11[%c0_27, %c0_28] : memref<1x128xf32, #tpu.memory_space<vmem>>, vector<1x128xf32>
    %36 = vector.broadcast %35 : vector<1x128xf32> to vector<16x128xf32>
    %37 = arith.addf %34, %36 : vector<16x128xf32>
    %38 = arith.truncf %37 : vector<16x128xf32> to vector<16x128xbf16>
    %c0_29 = arith.constant 0 : index
    %c0_30 = arith.constant 0 : index
    %39 = vector.load %arg12[%c0_29, %c0_30] : memref<16x128xbf16, #tpu.memory_space<vmem>>, vector<16x128xbf16>
    tpu.vector_store %arg12[%c0_29, %c0_30], %38 {strides = array<i32>} : memref<16x128xbf16, #tpu.memory_space<vmem>>, vector<16x128xbf16>,
    return
  }
  func.func @transform_0(%arg0: i32) -> (i32, i32) {
    %c0_i32 = arith.constant 0 : i32
    %c0_i32_0 = arith.constant 0 : i32
    return %arg0, %c0_i32 : i32, i32
  }
  func.func @transform_1(%arg0: i32) -> (i32, i32) {
    %c0_i32 = arith.constant 0 : i32
    %c0_i32_0 = arith.constant 0 : i32
    %c0_i32_1 = arith.constant 0 : i32
    return %c0_i32, %c0_i32_0 : i32, i32
  }
  func.func @transform_2(%arg0: i32) -> (i32, i32) {
    %c0_i32 = arith.constant 0 : i32
    %c0_i32_0 = arith.constant 0 : i32
    %c0_i32_1 = arith.constant 0 : i32
    return %c0_i32, %c0_i32_0 : i32, i32
  }
  func.func @transform_3(%arg0: i32) -> (i32, i32) {
    %c0_i32 = arith.constant 0 : i32
    %c0_i32_0 = arith.constant 0 : i32
    %c0_i32_1 = arith.constant 0 : i32
    return %c0_i32, %c0_i32_0 : i32, i32
  }
  func.func @transform_4(%arg0: i32) -> (i32, i32) {
    %c0_i32 = arith.constant 0 : i32
    %c0_i32_0 = arith.constant 0 : i32
    %c0_i32_1 = arith.constant 0 : i32
    return %c0_i32, %c0_i32_0 : i32, i32
  }
  func.func @transform_5(%arg0: i32) -> (i32, i32) {
    %c0_i32 = arith.constant 0 : i32
    %c0_i32_0 = arith.constant 0 : i32
    %c0_i32_1 = arith.constant 0 : i32
    return %c0_i32, %c0_i32_0 : i32, i32
  }
  func.func @transform_6(%arg0: i32) -> (i32, i32) {
    %c0_i32 = arith.constant 0 : i32
    %c0_i32_0 = arith.constant 0 : i32
    %c0_i32_1 = arith.constant 0 : i32
    return %c0_i32, %c0_i32_0 : i32, i32
  }
  func.func @transform_7(%arg0: i32) -> (i32, i32) {
    %c0_i32 = arith.constant 0 : i32
    %c0_i32_0 = arith.constant 0 : i32
    %c0_i32_1 = arith.constant 0 : i32
    return %c0_i32, %c0_i32_0 : i32, i32
  }
  func.func @transform_8(%arg0: i32) -> (i32, i32) {
    %c0_i32 = arith.constant 0 : i32
    %c0_i32_0 = arith.constant 0 : i32
    %c0_i32_1 = arith.constant 0 : i32
    return %c0_i32, %c0_i32_0 : i32, i32
  }
  func.func @transform_9(%arg0: i32) -> (i32, i32) {
    %c0_i32 = arith.constant 0 : i32
    %c0_i32_0 = arith.constant 0 : i32
    %c0_i32_1 = arith.constant 0 : i32
    return %c0_i32, %c0_i32_0 : i32, i32
  }
  func.func @transform_10(%arg0: i32) -> (i32, i32) {
    %c0_i32 = arith.constant 0 : i32
    %c0_i32_0 = arith.constant 0 : i32
    %c0_i32_1 = arith.constant 0 : i32
    return %c0_i32, %c0_i32_0 : i32, i32
  }
  func.func @transform_11(%arg0: i32) -> (i32, i32) {
    %c0_i32 = arith.constant 0 : i32
    %c0_i32_0 = arith.constant 0 : i32
    return %arg0, %c0_i32 : i32, i32
  }
}

</mosaic_0001>

<llo_original>
// kernel: tpu_custom_call.1
$region0: #{tpu_custom_call.1}
  #allocation0 [shape = 'u32[]', space=smem, size = 0x4, offset = 0x4, fixed_abs, tag = 'smem constant byte address 0x4 - core index']
  #allocation1 [shape = 'u32[144,128]{1,0:T(1,128)}', space=vmem, size = 0x12000, scoped, tag = 'internal scratch']
  %s0 = inlined_call_operand.vmem [shape: bf16[16,8], index: 0, kind: input, shape index: {}]
  %s1 = inlined_call_operand.vmem [shape: bf16[8,32], index: 1, kind: input, shape index: {}]
  %s2 = inlined_call_operand.vmem [shape: f32[1,32], index: 2, kind: input, shape index: {}]
  %s3 = inlined_call_operand.vmem [shape: bf16[32,64], index: 3, kind: input, shape index: {}]
  %s4 = inlined_call_operand.vmem [shape: f32[1,64], index: 4, kind: input, shape index: {}]
  %s5 = inlined_call_operand.hbm [shape: bf16[64,128], index: 5, kind: input, shape index: {}]
  %s6 = inlined_call_operand.vmem [shape: f32[1,128], index: 6, kind: input, shape index: {}]
  %s7 = inlined_call_operand.hbm [shape: bf16[128,256], index: 7, kind: input, shape index: {}]
  %s8 = inlined_call_operand.vmem [shape: f32[1,256], index: 8, kind: input, shape index: {}]
  %s9 = inlined_call_operand.hbm [shape: bf16[256,128], index: 9, kind: input, shape index: {}]
  %s10 = inlined_call_operand.vmem [shape: f32[1,128], index: 10, kind: input, shape index: {}]
  %s11 = inlined_call_operand.hbm [shape: bf16[16,128], index: 11, kind: output, shape index: {}]
  %s12 = sld [smem:[#allocation0]]
  $region66: #{tpu_custom_call.1} parent=0
    _
  %s14 = ssub.s32 1, %s12
  %s15 = scalar_select 0, %s14, %s12
  $region1: #{tpu_custom_call.1} parent=0
    #allocation2 [shape = 'u8[16384]{0}', space=vmem, size = 0x4000, scoped, tag = 'input window, operand 5, single buffered']
    #allocation3 [shape = 's32[1]{0}', space=sflag, size = 0x4, scoped, tag = 'scoped memory for tpu_custom_call.1']
    #allocation4 [shape = 's32[1]{0}', space=sflag, size = 0x4, scoped, tag = 'scoped memory for tpu_custom_call.1']
    #allocation5 [shape = 'u8[65536]{0}', space=vmem, size = 0x10000, scoped, tag = 'input window, operand 7, single buffered']
    #allocation6 [shape = 's32[1]{0}', space=sflag, size = 0x4, scoped, tag = 'scoped memory for tpu_custom_call.1']
    #allocation7 [shape = 'u8[65536]{0}', space=vmem, size = 0x10000, scoped, tag = 'input window, operand 9, single buffered']
    #allocation8 [shape = 'u8[4096]{0}', space=vmem, size = 0x1000, scoped, tag = 'output window, operand 0, single buffered']
    %16 = vsyncpa [#allocation3], 0
    %17 = vsyncpa [#allocation6], 0
    %18 = vsyncpa [#allocation4], 0
    // Predicated region
    $region2: #{tpu_custom_call.1} parent=1 // pred_check
      _
    $region3: #{tpu_custom_call.1} parent=1 // pred_check_branch
      %20 = sbr.rel (0) target = $region5
    $region4: #{tpu_custom_call.1} parent=1 // pred_region
      _
    $region5: #{tpu_custom_call.1} parent=1 // pred_fallthru
      _
    // Predicated region
    $region6: #{tpu_custom_call.1} parent=1 // pred_check
      _
    $region7: #{tpu_custom_call.1} parent=1 // pred_check_branch
      %22 = sbr.rel (0) target = $region9
    $region8: #{tpu_custom_call.1} parent=1 // pred_region
      _
    $region9: #{tpu_custom_call.1} parent=1 // pred_fallthru
      _
    // Predicated region
    $region10: #{tpu_custom_call.1} parent=1 // pred_check
      _
    $region11: #{tpu_custom_call.1} parent=1 // pred_check_branch
      %24 = sbr.rel (0) target = $region13
    $region12: #{tpu_custom_call.1} parent=1 // pred_region
      _
    $region13: #{tpu_custom_call.1} parent=1 // pred_fallthru
      _
    // Predicated region
    $region14: #{tpu_custom_call.1} parent=1 // pred_check
      _
    $region15: #{tpu_custom_call.1} parent=1 // pred_check_branch
      %26 = sbr.rel (0) target = $region17
    $region16: #{tpu_custom_call.1} parent=1 // pred_region
      _
    $region17: #{tpu_custom_call.1} parent=1 // pred_fallthru
      _
    // Predicated region
    $region18: #{tpu_custom_call.1} parent=1 // pred_check
      _
    $region19: #{tpu_custom_call.1} parent=1 // pred_check_branch
      %28 = sbr.rel (0) target = $region21
    $region20: #{tpu_custom_call.1} parent=1 // pred_region
      _
    $region21: #{tpu_custom_call.1} parent=1 // pred_fallthru
      _
    // Predicated region
    $region22: #{tpu_custom_call.1} parent=1 // pred_check
      _
    $region23: #{tpu_custom_call.1} parent=1 // pred_check_branch
      %30 = sbr.rel (0) target = $region25
    $region24: #{tpu_custom_call.1} parent=1 // pred_region
      %s32 = ssub.s32 512, 512
      %33 = vsyncadd [#allocation3], %s32
      %s34 = sshll.u32 [#allocation2], 4
      %s35 = int_to_ptr.vmem [resolvable:$true] %s34
      %40 = dma.hbm_to_vmem [thread:$0]  %s5, 512, %s35, [#allocation3], 64, 64, 4
    $region25: #{tpu_custom_call.1} parent=1 // pred_fallthru
      _
    // Predicated region
    $region26: #{tpu_custom_call.1} parent=1 // pred_check
      _
    $region27: #{tpu_custom_call.1} parent=1 // pred_check_branch
      %42 = sbr.rel (0) target = $region29
    $region28: #{tpu_custom_call.1} parent=1 // pred_region
      _
    $region29: #{tpu_custom_call.1} parent=1 // pred_fallthru
      _
    // Predicated region
    $region30: #{tpu_custom_call.1} parent=1 // pred_check
      _
    $region31: #{tpu_custom_call.1} parent=1 // pred_check_branch
      %44 = sbr.rel (0) target = $region33
    $region32: #{tpu_custom_call.1} parent=1 // pred_region
      %s46 = ssub.s32 2048, 2048
      %47 = vsyncadd [#allocation6], %s46
      %s48 = sshll.u32 [#allocation5], 4
      %s49 = int_to_ptr.vmem [resolvable:$true] %s48
      %54 = dma.hbm_to_vmem [thread:$0]  %s7, 2048, %s49, [#allocation6], 128, 128, 8
    $region33: #{tpu_custom_call.1} parent=1 // pred_fallthru
      _
    // Predicated region
    $region34: #{tpu_custom_call.1} parent=1 // pred_check
      _
    $region35: #{tpu_custom_call.1} parent=1 // pred_check_branch
      %56 = sbr.rel (0) target = $region37
    $region36: #{tpu_custom_call.1} parent=1 // pred_region
      _
    $region37: #{tpu_custom_call.1} parent=1 // pred_fallthru
      _
    // Predicated region
    $region38: #{tpu_custom_call.1} parent=1 // pred_check
      _
    $region39: #{tpu_custom_call.1} parent=1 // pred_check_branch
      %58 = sbr.rel (0) target = $region41
    $region40: #{tpu_custom_call.1} parent=1 // pred_region
      %s60 = ssub.s32 2048, 2048
      %61 = vsyncadd [#allocation6], %s60
      %s62 = sshll.u32 [#allocation7], 4
      %s63 = int_to_ptr.vmem [resolvable:$true] %s62
      %68 = dma.hbm_to_vmem [thread:$0]  %s9, 2048, %s63, [#allocation6], 64, 64, 4
    $region41: #{tpu_custom_call.1} parent=1 // pred_fallthru
      _
    // Predicated region
    $region42: #{tpu_custom_call.1} parent=1 // pred_check
      _
    $region43: #{tpu_custom_call.1} parent=1 // pred_check_branch
      %70 = sbr.rel (0) target = $region45
    $region44: #{tpu_custom_call.1} parent=1 // pred_region
      _
    $region45: #{tpu_custom_call.1} parent=1 // pred_fallthru
      _
    // Predicated region
    $region46: #{tpu_custom_call.1} parent=1 // pred_check
      _
    $region47: #{tpu_custom_call.1} parent=1 // pred_check_branch
      %72 = sbr.rel (0) target = $region49
    $region48: #{tpu_custom_call.1} parent=1 // pred_region
      %73 = dma.done [#allocation3], 512
    $region49: #{tpu_custom_call.1} parent=1 // pred_fallthru
      _
    // Predicated region
    $region50: #{tpu_custom_call.1} parent=1 // pred_check
      _
    $region51: #{tpu_custom_call.1} parent=1 // pred_check_branch
      %75 = sbr.rel (0) target = $region53
    $region52: #{tpu_custom_call.1} parent=1 // pred_region
      %76 = dma.done [#allocation6], 2048
    $region53: #{tpu_custom_call.1} parent=1 // pred_fallthru
      _
    // Predicated region
    $region54: #{tpu_custom_call.1} parent=1 // pred_check
      _
    $region55: #{tpu_custom_call.1} parent=1 // pred_check_branch
      %78 = sbr.rel (0) target = $region57
    $region56: #{tpu_custom_call.1} parent=1 // pred_region
      %79 = dma.done [#allocation6], 2048
    $region57: #{tpu_custom_call.1} parent=1 // pred_fallthru
      _
    %v81 = vld [vmem:[%s0] sm:$0xf]
    %v82 = vld [vmem:[%s0 + $0x4] sm:$0xf]
    %v83 = vld [vmem:[%s1] sm:$0xf]
    %v84 = vld [vmem:[%s2] sm:$0x1]
    %v86 = vlaneseq
    %v87 = vshrl.u32 %v86, 7
    %v88 = vsub.s32 0, %v87
    %v89 = vrot.slane %v84, %v88
    %v93 = vunpack.c.l.b16 %v81
    %v94 = vunpack.c.l.b16 %v82
    %v95 = vpack.c.b16 %v94, %v93
    %vm96 = vcmask 64512
    %v98 = vsel %vm96, %v95, 0
    %vm100 = vcmask 1043456
    %v102 = vsel %vm100, %v83, 0
    %104 = vmatprep.subr.bf16.mxu0 0
    %105 = vmatpush1.bf16.msra.mxu0 %v102
    %106 = vmatprep.subr.bf16.mxu0 0
    %107 = vmatpush1.bf16.msra.mxu0 0
    %108 = vmatprep.subr.bf16.mxu0 0
    %109 = vmatpush1.bf16.msra.mxu0 0
    %110 = vmatprep.subr.bf16.mxu0 0
    %111 = vmatpush1.bf16.msra.mxu0 0
    %112 = vmatprep.subr.bf16.mxu0 0
    %113 = vmatpush1.bf16.msra.mxu0 0
    %114 = vmatprep.subr.bf16.mxu0 0
    %115 = vmatpush1.bf16.msra.mxu0 0
    %116 = vmatprep.subr.bf16.mxu0 0
    %117 = vmatpush1.bf16.msra.mxu0 0
    %118 = vmatprep.subr.bf16.mxu0 0
    %119 = vmatpush1.bf16.msra.mxu0 0
    %120 = vmatprep.subr.bf16.mxu0 0
    %121 = vmatpush1.bf16.msra.mxu0 0
    %122 = vmatprep.subr.bf16.mxu0 0
    %123 = vmatpush1.bf16.msra.mxu0 0
    %124 = vmatprep.subr.bf16.mxu0 0
    %125 = vmatpush1.bf16.msra.mxu0 0
    %126 = vmatprep.subr.bf16.mxu0 0
    %127 = vmatpush1.bf16.msra.mxu0 0
    %128 = vmatprep.subr.bf16.mxu0 0
    %129 = vmatpush1.bf16.msra.mxu0 0
    %130 = vmatprep.subr.bf16.mxu0 0
    %131 = vmatpush1.bf16.msra.mxu0 0
    %132 = vmatprep.subr.bf16.mxu0 0
    %133 = vmatpush1.bf16.msra.mxu0 0
    %134 = vmatprep.subr.bf16.mxu0 0
    %135 = vmatpush1.bf16.msra.mxu0 0
    %136 = vmatprep.mubr.bf16.mxu0 0
    %137 = vmatmul.mubr.bf16.gmra.mrb[0].mxu0 %v98
    %v138 = vpop.f32.mrb[0].mxu0
    %v139 = vadd.f32 %v89, %v138
    %v140 = vpop.f32.mrb[0].mxu0
    %v141 = vpop.f32.mrb[0].mxu0
    %v142 = vadd.f32 %v89, %v141
    %v143 = vpop.f32.mrb[0].mxu0
    %144 = vdwg.mxu0
    %v145 = vmax.f32 %v139, 0.0
    %v146 = vmax.f32 %v142, 0.0
    %v147 = vpack.c.bf16 %v146, %v145
    %v148 = vld [vmem:[%s3] sm:$0xf]
    %v149 = vld [vmem:[%s3 + $0x4] sm:$0xf]
    %v150 = vld [vmem:[%s3 + $0x8] sm:$0xf]
    %v151 = vld [vmem:[%s3 + $0xc] sm:$0xf]
    %v152 = vld [vmem:[%s4] sm:$0x1]
    %v154 = vlaneseq
    %v155 = vshrl.u32 %v154, 7
    %v156 = vsub.s32 0, %v155
    %v157 = vrot.slane %v152, %v156
    %v163 = vunpack.c.l.b16 %v148
    %v164 = vunpack.c.l.b16 %v149
    %v165 = vunpack.c.l.b16 %v150
    %v166 = vunpack.c.l.b16 %v151
    %v167 = vpack.c.b16 %v164, %v163
    %v168 = vpack.c.b16 %v166, %v165
    %vm171 = vcmask 261120
    %v173 = vsel %vm171, %v147, 0
    %175 = vmatprep.subr.bf16.mxu0 0
    %176 = vmatpush1.bf16.msra.mxu0 %v167
    %177 = vmatprep.subr.bf16.mxu0 0
    %178 = vmatpush1.bf16.msra.mxu0 %v168
    %179 = vmatprep.subr.bf16.mxu0 0
    %180 = vmatpush1.bf16.msra.mxu0 0
    %181 = vmatprep.subr.bf16.mxu0 0
    %182 = vmatpush1.bf16.msra.mxu0 0
    %183 = vmatprep.subr.bf16.mxu0 0
    %184 = vmatpush1.bf16.msra.mxu0 0
    %185 = vmatprep.subr.bf16.mxu0 0
    %186 = vmatpush1.bf16.msra.mxu0 0
    %187 = vmatprep.subr.bf16.mxu0 0
    %188 = vmatpush1.bf16.msra.mxu0 0
    %189 = vmatprep.subr.bf16.mxu0 0
    %190 = vmatpush1.bf16.msra.mxu0 0
    %191 = vmatprep.subr.bf16.mxu0 0
    %192 = vmatpush1.bf16.msra.mxu0 0
    %193 = vmatprep.subr.bf16.mxu0 0
    %194 = vmatpush1.bf16.msra.mxu0 0
    %195 = vmatprep.subr.bf16.mxu0 0
    %196 = vmatpush1.bf16.msra.mxu0 0
    %197 = vmatprep.subr.bf16.mxu0 0
    %198 = vmatpush1.bf16.msra.mxu0 0
    %199 = vmatprep.subr.bf16.mxu0 0
    %200 = vmatpush1.bf16.msra.mxu0 0
    %201 = vmatprep.subr.bf16.mxu0 0
    %202 = vmatpush1.bf16.msra.mxu0 0
    %203 = vmatprep.subr.bf16.mxu0 0
    %204 = vmatpush1.bf16.msra.mxu0 0
    %205 = vmatprep.subr.bf16.mxu0 0
    %206 = vmatpush1.bf16.msra.mxu0 0
    %207 = vmatprep.mubr.bf16.mxu0 0
    %208 = vmatmul.mubr.bf16.gmra.mrb[0].mxu0 %v173
    %v209 = vpop.f32.mrb[0].mxu0
    %v210 = vadd.f32 %v157, %v209
    %v211 = vpop.f32.mrb[0].mxu0
    %v212 = vpop.f32.mrb[0].mxu0
    %v213 = vadd.f32 %v157, %v212
    %v214 = vpop.f32.mrb[0].mxu0
    %215 = vdwg.mxu0
    %v216 = vmax.f32 %v210, 0.0
    %v217 = vmax.f32 %v213, 0.0
    %v218 = vpack.c.bf16 %v217, %v216
    %v219 = vld [vmem:[#allocation2] sm:$0xf]
    %v220 = vld [vmem:[#allocation2 + $0x4] sm:$0xf]
    %v221 = vld [vmem:[#allocation2 + $0x8] sm:$0xf]
    %v222 = vld [vmem:[#allocation2 + $0xc] sm:$0xf]
    %v223 = vld [vmem:[#allocation2 + $0x10] sm:$0xf]
    %v224 = vld [vmem:[#allocation2 + $0x14] sm:$0xf]
    %v225 = vld [vmem:[#allocation2 + $0x18] sm:$0xf]
    %v226 = vld [vmem:[#allocation2 + $0x1c] sm:$0xf]
    %v227 = vld [vmem:[%s6] sm:$0x1]
    %v229 = vlaneseq
    %v230 = vshrl.u32 %v229, 7
    %v231 = vsub.s32 0, %v230
    %v232 = vrot.slane %v227, %v231
    %v242 = vunpack.c.l.b16 %v219
    %v243 = vunpack.c.l.b16 %v220
    %v244 = vunpack.c.l.b16 %v221
    %v245 = vunpack.c.l.b16 %v222
    %v246 = vunpack.c.l.b16 %v223
    %v247 = vunpack.c.l.b16 %v224
    %v248 = vunpack.c.l.b16 %v225
    %v249 = vunpack.c.l.b16 %v226
    %v250 = vpack.c.b16 %v243, %v242
    %v251 = vpack.c.b16 %v245, %v244
    %v252 = vpack.c.b16 %v247, %v246
    %v253 = vpack.c.b16 %v249, %v248
    %vm258 = vcmask 523264
    %v260 = vsel %vm258, %v218, 0
    %262 = vmatprep.subr.bf16.mxu0 0
    %263 = vmatpush1.bf16.msra.mxu0 %v250
    %264 = vmatprep.subr.bf16.mxu0 0
    %265 = vmatpush1.bf16.msra.mxu0 %v251
    %266 = vmatprep.subr.bf16.mxu0 0
    %267 = vmatpush1.bf16.msra.mxu0 %v252
    %268 = vmatprep.subr.bf16.mxu0 0
    %269 = vmatpush1.bf16.msra.mxu0 %v253
    %270 = vmatprep.subr.bf16.mxu0 0
    %271 = vmatpush1.bf16.msra.mxu0 0
    %272 = vmatprep.subr.bf16.mxu0 0
    %273 = vmatpush1.bf16.msra.mxu0 0
    %274 = vmatprep.subr.bf16.mxu0 0
    %275 = vmatpush1.bf16.msra.mxu0 0
    %276 = vmatprep.subr.bf16.mxu0 0
    %277 = vmatpush1.bf16.msra.mxu0 0
    %278 = vmatprep.subr.bf16.mxu0 0
    %279 = vmatpush1.bf16.msra.mxu0 0
    %280 = vmatprep.subr.bf16.mxu0 0
    %281 = vmatpush1.bf16.msra.mxu0 0
    %282 = vmatprep.subr.bf16.mxu0 0
    %283 = vmatpush1.bf16.msra.mxu0 0
    %284 = vmatprep.subr.bf16.mxu0 0
    %285 = vmatpush1.bf16.msra.mxu0 0
    %286 = vmatprep.subr.bf16.mxu0 0
    %287 = vmatpush1.bf16.msra.mxu0 0
    %288 = vmatprep.subr.bf16.mxu0 0
    %289 = vmatpush1.bf16.msra.mxu0 0
    %290 = vmatprep.subr.bf16.mxu0 0
    %291 = vmatpush1.bf16.msra.mxu0 0
    %292 = vmatprep.subr.bf16.mxu0 0
    %293 = vmatpush1.bf16.msra.mxu0 0
    %294 = vmatprep.mubr.bf16.mxu0 0
    %295 = vmatmul.mubr.bf16.gmra.mrb[0].mxu0 %v260
    %v296 = vpop.f32.mrb[0].mxu0
    %v297 = vadd.f32 %v232, %v296
    %v298 = vpop.f32.mrb[0].mxu0
    %v299 = vpop.f32.mrb[0].mxu0
    %v300 = vadd.f32 %v232, %v299
    %v301 = vpop.f32.mrb[0].mxu0
    %302 = vdwg.mxu0
    %v303 = vmax.f32 %v297, 0.0
    %v304 = vmax.f32 %v300, 0.0
    %v305 = vpack.c.bf16 %v304, %v303
    %v306 = vld [vmem:[#allocation5] sm:$0xff]
    %v307 = vld [vmem:[#allocation5 + $0x8] sm:$0xff]
    %v308 = vld [vmem:[#allocation5 + $0x10] sm:$0xff]
    %v309 = vld [vmem:[#allocation5 + $0x18] sm:$0xff]
    %v310 = vld [vmem:[#allocation5 + $0x20] sm:$0xff]
    %v311 = vld [vmem:[#allocation5 + $0x28] sm:$0xff]
    %v312 = vld [vmem:[#allocation5 + $0x30] sm:$0xff]
    %v313 = vld [vmem:[#allocation5 + $0x38] sm:$0xff]
    %v314 = vld [vmem:[#allocation5 + $0x40] sm:$0xff]
    %v315 = vld [vmem:[#allocation5 + $0x48] sm:$0xff]
    %v316 = vld [vmem:[#allocation5 + $0x50] sm:$0xff]
    %v317 = vld [vmem:[#allocation5 + $0x58] sm:$0xff]
    %v318 = vld [vmem:[#allocation5 + $0x60] sm:$0xff]
    %v319 = vld [vmem:[#allocation5 + $0x68] sm:$0xff]
    %v320 = vld [vmem:[#allocation5 + $0x70] sm:$0xff]
    %v321 = vld [vmem:[#allocation5 + $0x78] sm:$0xff]
    %v322 = vld [vmem:[%s8] sm:$0x3]
    %v324 = vlaneseq
    %v325 = vshrl.u32 %v324, 7
    %v326 = vsub.s32 0, %v325
    %v327 = vrot.slane %v322, %v326
    %v328 = vlaneseq
    %v329 = vshrl.u32 %v328, 7
    %v330 = vsub.s32 1, %v329
    %v331 = vrot.slane %v322, %v330
    %v350 = vunpack.c.l.b16 %v306
    %v351 = vunpack.c.h.b16 %v306
    %v352 = vunpack.c.l.b16 %v307
    %v353 = vunpack.c.h.b16 %v307
    %v354 = vunpack.c.l.b16 %v308
    %v355 = vunpack.c.h.b16 %v308
    %v356 = vunpack.c.l.b16 %v309
    %v357 = vunpack.c.h.b16 %v309
    %v358 = vunpack.c.l.b16 %v310
    %v359 = vunpack.c.h.b16 %v310
    %v360 = vunpack.c.l.b16 %v311
    %v361 = vunpack.c.h.b16 %v311
    %v362 = vunpack.c.l.b16 %v312
    %v363 = vunpack.c.h.b16 %v312
    %v364 = vunpack.c.l.b16 %v313
    %v365 = vunpack.c.h.b16 %v313
    %v366 = vunpack.c.l.b16 %v314
    %v367 = vunpack.c.h.b16 %v314
    %v368 = vunpack.c.l.b16 %v315
    %v369 = vunpack.c.h.b16 %v315
    %v370 = vunpack.c.l.b16 %v316
    %v371 = vunpack.c.h.b16 %v316
    %v372 = vunpack.c.l.b16 %v317
    %v373 = vunpack.c.h.b16 %v317
    %v374 = vunpack.c.l.b16 %v318
    %v375 = vunpack.c.h.b16 %v318
    %v376 = vunpack.c.l.b16 %v319
    %v377 = vunpack.c.h.b16 %v319
    %v378 = vunpack.c.l.b16 %v320
    %v379 = vunpack.c.h.b16 %v320
    %v380 = vunpack.c.l.b16 %v321
    %v381 = vunpack.c.h.b16 %v321
    %v382 = vpack.c.b16 %v352, %v350
    %v383 = vpack.c.b16 %v353, %v351
    %v384 = vpack.c.b16 %v356, %v354
    %v385 = vpack.c.b16 %v357, %v355
    %v386 = vpack.c.b16 %v360, %v358
    %v387 = vpack.c.b16 %v361, %v359
    %v388 = vpack.c.b16 %v364, %v362
    %v389 = vpack.c.b16 %v365, %v363
    %v390 = vpack.c.b16 %v368, %v366
    %v391 = vpack.c.b16 %v369, %v367
    %v392 = vpack.c.b16 %v372, %v370
    %v393 = vpack.c.b16 %v373, %v371
    %v394 = vpack.c.b16 %v376, %v374
    %v395 = vpack.c.b16 %v377, %v375
    %v396 = vpack.c.b16 %v380, %v378
    %v397 = vpack.c.b16 %v381, %v379
    %414 = vmatprep.subr.bf16.mxu0 %v383
    %415 = vmatpush1.bf16.msra.mxu0 %v382
    %416 = vmatprep.subr.bf16.mxu0 %v385
    %417 = vmatpush1.bf16.msra.mxu0 %v384
    %418 = vmatprep.subr.bf16.mxu0 %v387
    %419 = vmatpush1.bf16.msra.mxu0 %v386
    %420 = vmatprep.subr.bf16.mxu0 %v389
    %421 = vmatpush1.bf16.msra.mxu0 %v388
    %422 = vmatprep.subr.bf16.mxu0 %v391
    %423 = vmatpush1.bf16.msra.mxu0 %v390
    %424 = vmatprep.subr.bf16.mxu0 %v393
    %425 = vmatpush1.bf16.msra.mxu0 %v392
    %426 = vmatprep.subr.bf16.mxu0 %v395
    %427 = vmatpush1.bf16.msra.mxu0 %v394
    %428 = vmatprep.subr.bf16.mxu0 %v397
    %429 = vmatpush1.bf16.msra.mxu0 %v396
    %430 = vmatprep.subr.bf16.mxu0 0
    %431 = vmatpush1.bf16.msra.mxu0 0
    %432 = vmatprep.subr.bf16.mxu0 0
    %433 = vmatpush1.bf16.msra.mxu0 0
    %434 = vmatprep.subr.bf16.mxu0 0
    %435 = vmatpush1.bf16.msra.mxu0 0
    %436 = vmatprep.subr.bf16.mxu0 0
    %437 = vmatpush1.bf16.msra.mxu0 0
    %438 = vmatprep.subr.bf16.mxu0 0
    %439 = vmatpush1.bf16.msra.mxu0 0
    %440 = vmatprep.subr.bf16.mxu0 0
    %441 = vmatpush1.bf16.msra.mxu0 0
    %442 = vmatprep.subr.bf16.mxu0 0
    %443 = vmatpush1.bf16.msra.mxu0 0
    %444 = vmatprep.subr.bf16.mxu0 0
    %445 = vmatpush1.bf16.msra.mxu0 0
    %446 = vmatprep.mubr.bf16.mxu0 0
    %447 = vmatmul.mubr.bf16.gmra.mrb[0].mxu0 %v305
    %v448 = vpop.f32.mrb[0].mxu0
    %v449 = vadd.f32 %v327, %v448
    %v450 = vpop.f32.mrb[0].mxu0
    %v451 = vadd.f32 %v331, %v450
    %v452 = vpop.f32.mrb[0].mxu0
    %v453 = vadd.f32 %v327, %v452
    %v454 = vpop.f32.mrb[0].mxu0
    %v455 = vadd.f32 %v331, %v454
    %456 = vdwg.mxu0
    %v457 = vmax.f32 %v449, 0.0
    %v458 = vmax.f32 %v451, 0.0
    %v459 = vmax.f32 %v453, 0.0
    %v460 = vmax.f32 %v455, 0.0
    %v461 = vpack.c.bf16 %v459, %v457
    %v462 = vpack.c.bf16 %v460, %v458
    %v463 = vld [vmem:[#allocation7] sm:$0xf]
    %v464 = vld [vmem:[#allocation7 + $0x4] sm:$0xf]
    %v465 = vld [vmem:[#allocation7 + $0x8] sm:$0xf]
    %v466 = vld [vmem:[#allocation7 + $0xc] sm:$0xf]
    %v467 = vld [vmem:[#allocation7 + $0x10] sm:$0xf]
    %v468 = vld [vmem:[#allocation7 + $0x14] sm:$0xf]
    %v469 = vld [vmem:[#allocation7 + $0x18] sm:$0xf]
    %v470 = vld [vmem:[#allocation7 + $0x1c] sm:$0xf]
    %v471 = vld [vmem:[#allocation7 + $0x20] sm:$0xf]
    %v472 = vld [vmem:[#allocation7 + $0x24] sm:$0xf]
    %v473 = vld [vmem:[#allocation7 + $0x28] sm:$0xf]
    %v474 = vld [vmem:[#allocation7 + $0x2c] sm:$0xf]
    %v475 = vld [vmem:[#allocation7 + $0x30] sm:$0xf]
    %v476 = vld [vmem:[#allocation7 + $0x34] sm:$0xf]
    %v477 = vld [vmem:[#allocation7 + $0x38] sm:$0xf]
    %v478 = vld [vmem:[#allocation7 + $0x3c] sm:$0xf]
    %v479 = vld [vmem:[#allocation7 + $0x40] sm:$0xf]
    %v480 = vld [vmem:[#allocation7 + $0x44] sm:$0xf]
    %v481 = vld [vmem:[#allocation7 + $0x48] sm:$0xf]
    %v482 = vld [vmem:[#allocation7 + $0x4c] sm:$0xf]
    %v483 = vld [vmem:[#allocation7 + $0x50] sm:$0xf]
    %v484 = vld [vmem:[#allocation7 + $0x54] sm:$0xf]
    %v485 = vld [vmem:[#allocation7 + $0x58] sm:$0xf]
    %v486 = vld [vmem:[#allocation7 + $0x5c] sm:$0xf]
    %v487 = vld [vmem:[#allocation7 + $0x60] sm:$0xf]
    %v488 = vld [vmem:[#allocation7 + $0x64] sm:$0xf]
    %v489 = vld [vmem:[#allocation7 + $0x68] sm:$0xf]
    %v490 = vld [vmem:[#allocation7 + $0x6c] sm:$0xf]
    %v491 = vld [vmem:[#allocation7 + $0x70] sm:$0xf]
    %v492 = vld [vmem:[#allocation7 + $0x74] sm:$0xf]
    %v493 = vld [vmem:[#allocation7 + $0x78] sm:$0xf]
    %v494 = vld [vmem:[#allocation7 + $0x7c] sm:$0xf]
    %v495 = vld [vmem:[%s10] sm:$0x1]
    %v497 = vlaneseq
    %v498 = vshrl.u32 %v497, 7
    %v499 = vsub.s32 0, %v498
    %v500 = vrot.slane %v495, %v499
    %v534 = vunpack.c.l.b16 %v463
    %v535 = vunpack.c.l.b16 %v464
    %v536 = vunpack.c.l.b16 %v465
    %v537 = vunpack.c.l.b16 %v466
    %v538 = vunpack.c.l.b16 %v467
    %v539 = vunpack.c.l.b16 %v468
    %v540 = vunpack.c.l.b16 %v469
    %v541 = vunpack.c.l.b16 %v470
    %v542 = vunpack.c.l.b16 %v471
    %v543 = vunpack.c.l.b16 %v472
    %v544 = vunpack.c.l.b16 %v473
    %v545 = vunpack.c.l.b16 %v474
    %v546 = vunpack.c.l.b16 %v475
    %v547 = vunpack.c.l.b16 %v476
    %v548 = vunpack.c.l.b16 %v477
    %v549 = vunpack.c.l.b16 %v478
    %v550 = vunpack.c.l.b16 %v479
    %v551 = vunpack.c.l.b16 %v480
    %v552 = vunpack.c.l.b16 %v481
    %v553 = vunpack.c.l.b16 %v482
    %v554 = vunpack.c.l.b16 %v483
    %v555 = vunpack.c.l.b16 %v484
    %v556 = vunpack.c.l.b16 %v485
    %v557 = vunpack.c.l.b16 %v486
    %v558 = vunpack.c.l.b16 %v487
    %v559 = vunpack.c.l.b16 %v488
    %v560 = vunpack.c.l.b16 %v489
    %v561 = vunpack.c.l.b16 %v490
    %v562 = vunpack.c.l.b16 %v491
    %v563 = vunpack.c.l.b16 %v492
    %v564 = vunpack.c.l.b16 %v493
    %v565 = vunpack.c.l.b16 %v494
    %v566 = vpack.c.b16 %v535, %v534
    %v567 = vpack.c.b16 %v537, %v536
    %v568 = vpack.c.b16 %v539, %v538
    %v569 = vpack.c.b16 %v541, %v540
    %v570 = vpack.c.b16 %v543, %v542
    %v571 = vpack.c.b16 %v545, %v544
    %v572 = vpack.c.b16 %v547, %v546
    %v573 = vpack.c.b16 %v549, %v548
    %v574 = vpack.c.b16 %v551, %v550
    %v575 = vpack.c.b16 %v553, %v552
    %v576 = vpack.c.b16 %v555, %v554
    %v577 = vpack.c.b16 %v557, %v556
    %v578 = vpack.c.b16 %v559, %v558
    %v579 = vpack.c.b16 %v561, %v560
    %v580 = vpack.c.b16 %v563, %v562
    %v581 = vpack.c.b16 %v565, %v564
    %598 = vmatprep.subr.bf16.mxu0 0
    %599 = vmatpush1.bf16.msra.mxu0 %v566
    %600 = vmatprep.subr.bf16.mxu0 0
    %601 = vmatpush1.bf16.msra.mxu0 %v567
    %602 = vmatprep.subr.bf16.mxu0 0
    %603 = vmatpush1.bf16.msra.mxu0 %v568
    %604 = vmatprep.subr.bf16.mxu0 0
    %605 = vmatpush1.bf16.msra.mxu0 %v569
    %606 = vmatprep.subr.bf16.mxu0 0
    %607 = vmatpush1.bf16.msra.mxu0 %v570
    %608 = vmatprep.subr.bf16.mxu0 0
    %609 = vmatpush1.bf16.msra.mxu0 %v571
    %610 = vmatprep.subr.bf16.mxu0 0
    %611 = vmatpush1.bf16.msra.mxu0 %v572
    %612 = vmatprep.subr.bf16.mxu0 0
    %613 = vmatpush1.bf16.msra.mxu0 %v573
    %614 = vmatprep.subr.bf16.mxu0 0
    %615 = vmatpush1.bf16.msra.mxu0 %v574
    %616 = vmatprep.subr.bf16.mxu0 0
    %617 = vmatpush1.bf16.msra.mxu0 %v575
    %618 = vmatprep.subr.bf16.mxu0 0
    %619 = vmatpush1.bf16.msra.mxu0 %v576
    %620 = vmatprep.subr.bf16.mxu0 0
    %621 = vmatpush1.bf16.msra.mxu0 %v577
    %622 = vmatprep.subr.bf16.mxu0 0
    %623 = vmatpush1.bf16.msra.mxu0 %v578
    %624 = vmatprep.subr.bf16.mxu0 0
    %625 = vmatpush1.bf16.msra.mxu0 %v579
    %626 = vmatprep.subr.bf16.mxu0 0
    %627 = vmatpush1.bf16.msra.mxu0 %v580
    %628 = vmatprep.subr.bf16.mxu0 0
    %629 = vmatpush1.bf16.msra.mxu0 %v581
    %630 = vmatprep.mubr.bf16.mxu0 %v462
    %631 = vmatmul.mubr.bf16.gmra.mrb[0].mxu0 %v461
    %v632 = vpop.f32.mrb[0].mxu0
    %v633 = vadd.f32 %v500, %v632
    %v634 = vpop.f32.mrb[0].mxu0
    %v635 = vpop.f32.mrb[0].mxu0
    %v636 = vadd.f32 %v500, %v635
    %v637 = vpop.f32.mrb[0].mxu0
    %638 = vdwg.mxu0
    %v639 = vpack.c.bf16 %v636, %v633
    %v641 = vunpack.c.l.b16 %v639
    %v642 = vunpack.c.h.b16 %v639
    %v643 = vpack.c.b16 %v641, %v641
    %v644 = vpack.c.b16 %v642, %v642
    %647 = vst [vmem:[#allocation8] sm:$0xf] %v643
    %648 = vst [vmem:[#allocation8 + $0x4] sm:$0xf] %v644
    // Predicated region
    $region58: #{tpu_custom_call.1} parent=1 // pred_check
      _
    $region59: #{tpu_custom_call.1} parent=1 // pred_check_branch
      %650 = sbr.rel (0) target = $region61
    $region60: #{tpu_custom_call.1} parent=1 // pred_region
      %s652 = ssub.s32 128, 128
      %653 = vsyncadd [#allocation4], %s652
      %s654 = sshll.u32 [#allocation8], 4
      %s655 = int_to_ptr.vmem [resolvable:$true] %s654
      %660 = dma.vmem_to_hbm [thread:$0]  %s655, 128, %s11, [#allocation4], 64, 64, 4
    $region61: #{tpu_custom_call.1} parent=1 // pred_fallthru
      _
    // Predicated region
    $region62: #{tpu_custom_call.1} parent=1 // pred_check
      _
    $region63: #{tpu_custom_call.1} parent=1 // pred_check_branch
      %662 = sbr.rel (0) target = $region65
    $region64: #{tpu_custom_call.1} parent=1 // pred_region
      %663 = dma.done [#allocation4], 128
    $region65: #{tpu_custom_call.1} parent=1 // pred_fallthru
      _
    %664 = vsyncpa [#allocation3], 1
    %665 = vsyncpa [#allocation6], 1
    %666 = vsyncpa [#allocation4], 1

// kernel: tpu_custom_call.1
$region0: #{tpu_custom_call.1}
  #allocation0 [shape = 'u32[]', space=smem, size = 0x4, offset = 0x4, fixed_abs, tag = 'smem constant byte address 0x4 - core index']
  #allocation1 [shape = 'u32[144,128]{1,0:T(1,128)}', space=vmem, size = 0x12000, scoped, tag = 'internal scratch']
  %s0 = inlined_call_operand.vmem [shape: bf16[16,8], index: 0, kind: input, shape index: {}]
  %s1 = inlined_call_operand.vmem [shape: bf16[8,32], index: 1, kind: input, shape index: {}]
  %s2 = inlined_call_operand.vmem [shape: f32[1,32], index: 2, kind: input, shape index: {}]
  %s3 = inlined_call_operand.vmem [shape: bf16[32,64], index: 3, kind: input, shape index: {}]
  %s4 = inlined_call_operand.vmem [shape: f32[1,64], index: 4, kind: input, shape index: {}]
  %s5 = inlined_call_operand.hbm [shape: bf16[64,128], index: 5, kind: input, shape index: {}]
  %s6 = inlined_call_operand.vmem [shape: f32[1,128], index: 6, kind: input, shape index: {}]
  %s7 = inlined_call_operand.hbm [shape: bf16[128,256], index: 7, kind: input, shape index: {}]
  %s8 = inlined_call_operand.vmem [shape: f32[1,256], index: 8, kind: input, shape index: {}]
  %s9 = inlined_call_operand.hbm [shape: bf16[256,128], index: 9, kind: input, shape index: {}]
  %s10 = inlined_call_operand.vmem [shape: f32[1,128], index: 10, kind: input, shape index: {}]
  %s11 = inlined_call_operand.hbm [shape: bf16[16,128], index: 11, kind: output, shape index: {}]
  %s12 = sld [smem:[#allocation0]]
  $region66: #{tpu_custom_call.1} parent=0
    _
  %s14 = ssub.s32 1, %s12
  %s15 = scalar_select 0, %s14, %s12
  $region1: #{tpu_custom_call.1} parent=0
    #allocation2 [shape = 'u8[16384]{0}', space=vmem, size = 0x4000, scoped, tag = 'input window, operand 5, single buffered']
    #allocation3 [shape = 's32[1]{0}', space=sflag, size = 0x4, scoped, tag = 'scoped memory for tpu_custom_call.1']
    #allocation4 [shape = 's32[1]{0}', space=sflag, size = 0x4, scoped, tag = 'scoped memory for tpu_custom_call.1']
    #allocation5 [shape = 'u8[65536]{0}', space=vmem, size = 0x10000, scoped, tag = 'input window, operand 7, single buffered']
    #allocation6 [shape = 's32[1]{0}', space=sflag, size = 0x4, scoped, tag = 'scoped memory for tpu_custom_call.1']
    #allocation7 [shape = 'u8[65536]{0}', space=vmem, size = 0x10000, scoped, tag = 'input window, operand 9, single buffered']
    #allocation8 [shape = 'u8[4096]{0}', space=vmem, size = 0x1000, scoped, tag = 'output window, operand 0, single buffered']
    %16 = vsyncpa [#allocation3], 0
    %17 = vsyncpa [#allocation6], 0
    %18 = vsyncpa [#allocation4], 0
    // Predicated region
    $region2: #{tpu_custom_call.1} parent=1 // pred_check
      _
    $region3: #{tpu_custom_call.1} parent=1 // pred_check_branch
      %20 = sbr.rel (0) target = $region5
    $region4: #{tpu_custom_call.1} parent=1 // pred_region
      _
    $region5: #{tpu_custom_call.1} parent=1 // pred_fallthru
      _
    // Predicated region
    $region6: #{tpu_custom_call.1} parent=1 // pred_check
      _
    $region7: #{tpu_custom_call.1} parent=1 // pred_check_branch
      %22 = sbr.rel (0) target = $region9
    $region8: #{tpu_custom_call.1} parent=1 // pred_region
      _
    $region9: #{tpu_custom_call.1} parent=1 // pred_fallthru
      _
    // Predicated region
    $region10: #{tpu_custom_call.1} parent=1 // pred_check
      _
    $region11: #{tpu_custom_call.1} parent=1 // pred_check_branch
      %24 = sbr.rel (0) target = $region13
    $region12: #{tpu_custom_call.1} parent=1 // pred_region
      _
    $region13: #{tpu_custom_call.1} parent=1 // pred_fallthru
      _
    // Predicated region
    $region14: #{tpu_custom_call.1} parent=1 // pred_check
      _
    $region15: #{tpu_custom_call.1} parent=1 // pred_check_branch
      %26 = sbr.rel (0) target = $region17
    $region16: #{tpu_custom_call.1} parent=1 // pred_region
      _
    $region17: #{tpu_custom_call.1} parent=1 // pred_fallthru
      _
    // Predicated region
    $region18: #{tpu_custom_call.1} parent=1 // pred_check
      _
    $region19: #{tpu_custom_call.1} parent=1 // pred_check_branch
      %28 = sbr.rel (0) target = $region21
    $region20: #{tpu_custom_call.1} parent=1 // pred_region
      _
    $region21: #{tpu_custom_call.1} parent=1 // pred_fallthru
      _
    // Predicated region
    $region22: #{tpu_custom_call.1} parent=1 // pred_check
      _
    $region23: #{tpu_custom_call.1} parent=1 // pred_check_branch
      %30 = sbr.rel (0) target = $region25
    $region24: #{tpu_custom_call.1} parent=1 // pred_region
      %s32 = ssub.s32 512, 512
      %33 = vsyncadd [#allocation3], %s32
      %s34 = sshll.u32 [#allocation2], 4
      %s35 = int_to_ptr.vmem [resolvable:$true] %s34
      %40 = dma.hbm_to_vmem [thread:$0]  %s5, 512, %s35, [#allocation3], 64, 64, 4
    $region25: #{tpu_custom_call.1} parent=1 // pred_fallthru
      _
    // Predicated region
    $region26: #{tpu_custom_call.1} parent=1 // pred_check
      _
    $region27: #{tpu_custom_call.1} parent=1 // pred_check_branch
      %42 = sbr.rel (0) target = $region29
    $region28: #{tpu_custom_call.1} parent=1 // pred_region
      _
    $region29: #{tpu_custom_call.1} parent=1 // pred_fallthru
      _
    // Predicated region
    $region30: #{tpu_custom_call.1} parent=1 // pred_check
      _
    $region31: #{tpu_custom_call.1} parent=1 // pred_check_branch
      %44 = sbr.rel (0) target = $region33
    $region32: #{tpu_custom_call.1} parent=1 // pred_region
      %s46 = ssub.s32 2048, 2048
      %47 = vsyncadd [#allocation6], %s46
      %s48 = sshll.u32 [#allocation5], 4
      %s49 = int_to_ptr.vmem [resolvable:$true] %s48
      %54 = dma.hbm_to_vmem [thread:$0]  %s7, 2048, %s49, [#allocation6], 128, 128, 8
    $region33: #{tpu_custom_call.1} parent=1 // pred_fallthru
      _
    // Predicated region
    $region34: #{tpu_custom_call.1} parent=1 // pred_check
      _
    $region35: #{tpu_custom_call.1} parent=1 // pred_check_branch
      %56 = sbr.rel (0) target = $region37
    $region36: #{tpu_custom_call.1} parent=1 // pred_region
      _
    $region37: #{tpu_custom_call.1} parent=1 // pred_fallthru
      _
    // Predicated region
    $region38: #{tpu_custom_call.1} parent=1 // pred_check
      _
    $region39: #{tpu_custom_call.1} parent=1 // pred_check_branch
      %58 = sbr.rel (0) target = $region41
    $region40: #{tpu_custom_call.1} parent=1 // pred_region
      %s60 = ssub.s32 2048, 2048
      %61 = vsyncadd [#allocation6], %s60
      %s62 = sshll.u32 [#allocation7], 4
      %s63 = int_to_ptr.vmem [resolvable:$true] %s62
      %68 = dma.hbm_to_vmem [thread:$0]  %s9, 2048, %s63, [#allocation6], 64, 64, 4
    $region41: #{tpu_custom_call.1} parent=1 // pred_fallthru
      _
    // Predicated region
    $region42: #{tpu_custom_call.1} parent=1 // pred_check
      _
    $region43: #{tpu_custom_call.1} parent=1 // pred_check_branch
      %70 = sbr.rel (0) target = $region45
    $region44: #{tpu_custom_call.1} parent=1 // pred_region
      _
    $region45: #{tpu_custom_call.1} parent=1 // pred_fallthru
      _
    // Predicated region
    $region46: #{tpu_custom_call.1} parent=1 // pred_check
      _
    $region47: #{tpu_custom_call.1} parent=1 // pred_check_branch
      %72 = sbr.rel (0) target = $region49
    $region48: #{tpu_custom_call.1} parent=1 // pred_region
      %73 = dma.done [#allocation3], 512
    $region49: #{tpu_custom_call.1} parent=1 // pred_fallthru
      _
    // Predicated region
    $region50: #{tpu_custom_call.1} parent=1 // pred_check
      _
    $region51: #{tpu_custom_call.1} parent=1 // pred_check_branch
      %75 = sbr.rel (0) target = $region53
    $region52: #{tpu_custom_call.1} parent=1 // pred_region
      %76 = dma.done [#allocation6], 2048
    $region53: #{tpu_custom_call.1} parent=1 // pred_fallthru
      _
    // Predicated region
    $region54: #{tpu_custom_call.1} parent=1 // pred_check
      _
    $region55: #{tpu_custom_call.1} parent=1 // pred_check_branch
      %78 = sbr.rel (0) target = $region57
    $region56: #{tpu_custom_call.1} parent=1 // pred_region
      %79 = dma.done [#allocation6], 2048
    $region57: #{tpu_custom_call.1} parent=1 // pred_fallthru
      _
    %v81 = vld [vmem:[%s0] sm:$0xf]
    %v82 = vld [vmem:[%s0 + $0x4] sm:$0xf]
    %v83 = vld [vmem:[%s1] sm:$0xf]
    %v84 = vld [vmem:[%s2] sm:$0x1]
    %v86 = vlaneseq
    %v87 = vshrl.u32 %v86, 7
    %v88 = vsub.s32 0, %v87
    %v89 = vrot.slane %v84, %v88
    %v93 = vunpack.c.l.b16 %v81
    %v94 = vunpack.c.l.b16 %v82
    %v95 = vpack.c.b16 %v94, %v93
    %vm96 = vcmask 64512
    %v98 = vsel %vm96, %v95, 0
    %vm100 = vcmask 1043456
    %v102 = vsel %vm100, %v83, 0
    %104 = vmatprep.subr.bf16.mxu0 0
    %105 = vmatpush1.bf16.msra.mxu0 %v102
    %106 = vmatprep.subr.bf16.mxu0 0
    %107 = vmatpush1.bf16.msra.mxu0 0
    %108 = vmatprep.subr.bf16.mxu0 0
    %109 = vmatpush1.bf16.msra.mxu0 0
    %110 = vmatprep.subr.bf16.mxu0 0
    %111 = vmatpush1.bf16.msra.mxu0 0
    %112 = vmatprep.subr.bf16.mxu0 0
    %113 = vmatpush1.bf16.msra.mxu0 0
    %114 = vmatprep.subr.bf16.mxu0 0
    %115 = vmatpush1.bf16.msra.mxu0 0
    %116 = vmatprep.subr.bf16.mxu0 0
    %117 = vmatpush1.bf16.msra.mxu0 0
    %118 = vmatprep.subr.bf16.mxu0 0
    %119 = vmatpush1.bf16.msra.mxu0 0
    %120 = vmatprep.subr.bf16.mxu0 0
    %121 = vmatpush1.bf16.msra.mxu0 0
    %122 = vmatprep.subr.bf16.mxu0 0
    %123 = vmatpush1.bf16.msra.mxu0 0
    %124 = vmatprep.subr.bf16.mxu0 0
    %125 = vmatpush1.bf16.msra.mxu0 0
    %126 = vmatprep.subr.bf16.mxu0 0
    %127 = vmatpush1.bf16.msra.mxu0 0
    %128 = vmatprep.subr.bf16.mxu0 0
    %129 = vmatpush1.bf16.msra.mxu0 0
    %130 = vmatprep.subr.bf16.mxu0 0
    %131 = vmatpush1.bf16.msra.mxu0 0
    %132 = vmatprep.subr.bf16.mxu0 0
    %133 = vmatpush1.bf16.msra.mxu0 0
    %134 = vmatprep.subr.bf16.mxu0 0
    %135 = vmatpush1.bf16.msra.mxu0 0
    %136 = vmatprep.mubr.bf16.mxu0 0
    %137 = vmatmul.mubr.bf16.gmra.mrb[0].mxu0 %v98
    %v138 = vpop.f32.mrb[0].mxu0
    %v139 = vadd.f32 %v89, %v138
    %v140 = vpop.f32.mrb[0].mxu0
    %v141 = vpop.f32.mrb[0].mxu0
    %v142 = vadd.f32 %v89, %v141
    %v143 = vpop.f32.mrb[0].mxu0
    %144 = vdwg.mxu0
    %v145 = vmax.f32 %v139, 0.0
    %v146 = vmax.f32 %v142, 0.0
    %v147 = vpack.c.bf16 %v146, %v145
    %v148 = vld [vmem:[%s3] sm:$0xf]
    %v149 = vld [vmem:[%s3 + $0x4] sm:$0xf]
    %v150 = vld [vmem:[%s3 + $0x8] sm:$0xf]
    %v151 = vld [vmem:[%s3 + $0xc] sm:$0xf]
    %v152 = vld [vmem:[%s4] sm:$0x1]
    %v154 = vlaneseq
    %v155 = vshrl.u32 %v154, 7
    %v156 = vsub.s32 0, %v155
    %v157 = vrot.slane %v152, %v156
    %v163 = vunpack.c.l.b16 %v148
    %v164 = vunpack.c.l.b16 %v149
    %v165 = vunpack.c.l.b16 %v150
    %v166 = vunpack.c.l.b16 %v151
    %v167 = vpack.c.b16 %v164, %v163
    %v168 = vpack.c.b16 %v166, %v165
    %vm171 = vcmask 261120
    %v173 = vsel %vm171, %v147, 0
    %175 = vmatprep.subr.bf16.mxu0 0
    %176 = vmatpush1.bf16.msra.mxu0 %v167
    %177 = vmatprep.subr.bf16.mxu0 0
    %178 = vmatpush1.bf16.msra.mxu0 %v168
    %179 = vmatprep.subr.bf16.mxu0 0
    %180 = vmatpush1.bf16.msra.mxu0 0
    %181 = vmatprep.subr.bf16.mxu0 0
    %182 = vmatpush1.bf16.msra.mxu0 0
    %183 = vmatprep.subr.bf16.mxu0 0
    %184 = vmatpush1.bf16.msra.mxu0 0
    %185 = vmatprep.subr.bf16.mxu0 0
    %186 = vmatpush1.bf16.msra.mxu0 0
    %187 = vmatprep.subr.bf16.mxu0 0
    %188 = vmatpush1.bf16.msra.mxu0 0
    %189 = vmatprep.subr.bf16.mxu0 0
    %190 = vmatpush1.bf16.msra.mxu0 0
    %191 = vmatprep.subr.bf16.mxu0 0
    %192 = vmatpush1.bf16.msra.mxu0 0
    %193 = vmatprep.subr.bf16.mxu0 0
    %194 = vmatpush1.bf16.msra.mxu0 0
    %195 = vmatprep.subr.bf16.mxu0 0
    %196 = vmatpush1.bf16.msra.mxu0 0
    %197 = vmatprep.subr.bf16.mxu0 0
    %198 = vmatpush1.bf16.msra.mxu0 0
    %199 = vmatprep.subr.bf16.mxu0 0
    %200 = vmatpush1.bf16.msra.mxu0 0
    %201 = vmatprep.subr.bf16.mxu0 0
    %202 = vmatpush1.bf16.msra.mxu0 0
    %203 = vmatprep.subr.bf16.mxu0 0
    %204 = vmatpush1.bf16.msra.mxu0 0
    %205 = vmatprep.subr.bf16.mxu0 0
    %206 = vmatpush1.bf16.msra.mxu0 0
    %207 = vmatprep.mubr.bf16.mxu0 0
    %208 = vmatmul.mubr.bf16.gmra.mrb[0].mxu0 %v173
    %v209 = vpop.f32.mrb[0].mxu0
    %v210 = vadd.f32 %v157, %v209
    %v211 = vpop.f32.mrb[0].mxu0
    %v212 = vpop.f32.mrb[0].mxu0
    %v213 = vadd.f32 %v157, %v212
    %v214 = vpop.f32.mrb[0].mxu0
    %215 = vdwg.mxu0
    %v216 = vmax.f32 %v210, 0.0
    %v217 = vmax.f32 %v213, 0.0
    %v218 = vpack.c.bf16 %v217, %v216
    %v219 = vld [vmem:[#allocation2] sm:$0xf]
    %v220 = vld [vmem:[#allocation2 + $0x4] sm:$0xf]
    %v221 = vld [vmem:[#allocation2 + $0x8] sm:$0xf]
    %v222 = vld [vmem:[#allocation2 + $0xc] sm:$0xf]
    %v223 = vld [vmem:[#allocation2 + $0x10] sm:$0xf]
    %v224 = vld [vmem:[#allocation2 + $0x14] sm:$0xf]
    %v225 = vld [vmem:[#allocation2 + $0x18] sm:$0xf]
    %v226 = vld [vmem:[#allocation2 + $0x1c] sm:$0xf]
    %v227 = vld [vmem:[%s6] sm:$0x1]
    %v229 = vlaneseq
    %v230 = vshrl.u32 %v229, 7
    %v231 = vsub.s32 0, %v230
    %v232 = vrot.slane %v227, %v231
    %v242 = vunpack.c.l.b16 %v219
    %v243 = vunpack.c.l.b16 %v220
    %v244 = vunpack.c.l.b16 %v221
    %v245 = vunpack.c.l.b16 %v222
    %v246 = vunpack.c.l.b16 %v223
    %v247 = vunpack.c.l.b16 %v224
    %v248 = vunpack.c.l.b16 %v225
    %v249 = vunpack.c.l.b16 %v226
    %v250 = vpack.c.b16 %v243, %v242
    %v251 = vpack.c.b16 %v245, %v244
    %v252 = vpack.c.b16 %v247, %v246
    %v253 = vpack.c.b16 %v249, %v248
    %vm258 = vcmask 523264
    %v260 = vsel %vm258, %v218, 0
    %262 = vmatprep.subr.bf16.mxu0 0
    %263 = vmatpush1.bf16.msra.mxu0 %v250
    %264 = vmatprep.subr.bf16.mxu0 0
    %265 = vmatpush1.bf16.msra.mxu0 %v251
    %266 = vmatprep.subr.bf16.mxu0 0
    %267 = vmatpush1.bf16.msra.mxu0 %v252
    %268 = vmatprep.subr.bf16.mxu0 0
    %269 = vmatpush1.bf16.msra.mxu0 %v253
    %270 = vmatprep.subr.bf16.mxu0 0
    %271 = vmatpush1.bf16.msra.mxu0 0
    %272 = vmatprep.subr.bf16.mxu0 0
    %273 = vmatpush1.bf16.msra.mxu0 0
    %274 = vmatprep.subr.bf16.mxu0 0
    %275 = vmatpush1.bf16.msra.mxu0 0
    %276 = vmatprep.subr.bf16.mxu0 0
    %277 = vmatpush1.bf16.msra.mxu0 0
    %278 = vmatprep.subr.bf16.mxu0 0
    %279 = vmatpush1.bf16.msra.mxu0 0
    %280 = vmatprep.subr.bf16.mxu0 0
    %281 = vmatpush1.bf16.msra.mxu0 0
    %282 = vmatprep.subr.bf16.mxu0 0
    %283 = vmatpush1.bf16.msra.mxu0 0
    %284 = vmatprep.subr.bf16.mxu0 0
    %285 = vmatpush1.bf16.msra.mxu0 0
    %286 = vmatprep.subr.bf16.mxu0 0
    %287 = vmatpush1.bf16.msra.mxu0 0
    %288 = vmatprep.subr.bf16.mxu0 0
    %289 = vmatpush1.bf16.msra.mxu0 0
    %290 = vmatprep.subr.bf16.mxu0 0
    %291 = vmatpush1.bf16.msra.mxu0 0
    %292 = vmatprep.subr.bf16.mxu0 0
    %293 = vmatpush1.bf16.msra.mxu0 0
    %294 = vmatprep.mubr.bf16.mxu0 0
    %295 = vmatmul.mubr.bf16.gmra.mrb[0].mxu0 %v260
    %v296 = vpop.f32.mrb[0].mxu0
    %v297 = vadd.f32 %v232, %v296
    %v298 = vpop.f32.mrb[0].mxu0
    %v299 = vpop.f32.mrb[0].mxu0
    %v300 = vadd.f32 %v232, %v299
    %v301 = vpop.f32.mrb[0].mxu0
    %302 = vdwg.mxu0
    %v303 = vmax.f32 %v297, 0.0
    %v304 = vmax.f32 %v300, 0.0
    %v305 = vpack.c.bf16 %v304, %v303
    %v306 = vld [vmem:[#allocation5] sm:$0xff]
    %v307 = vld [vmem:[#allocation5 + $0x8] sm:$0xff]
    %v308 = vld [vmem:[#allocation5 + $0x10] sm:$0xff]
    %v309 = vld [vmem:[#allocation5 + $0x18] sm:$0xff]
    %v310 = vld [vmem:[#allocation5 + $0x20] sm:$0xff]
    %v311 = vld [vmem:[#allocation5 + $0x28] sm:$0xff]
    %v312 = vld [vmem:[#allocation5 + $0x30] sm:$0xff]
    %v313 = vld [vmem:[#allocation5 + $0x38] sm:$0xff]
    %v314 = vld [vmem:[#allocation5 + $0x40] sm:$0xff]
    %v315 = vld [vmem:[#allocation5 + $0x48] sm:$0xff]
    %v316 = vld [vmem:[#allocation5 + $0x50] sm:$0xff]
    %v317 = vld [vmem:[#allocation5 + $0x58] sm:$0xff]
    %v318 = vld [vmem:[#allocation5 + $0x60] sm:$0xff]
    %v319 = vld [vmem:[#allocation5 + $0x68] sm:$0xff]
    %v320 = vld [vmem:[#allocation5 + $0x70] sm:$0xff]
    %v321 = vld [vmem:[#allocation5 + $0x78] sm:$0xff]
    %v322 = vld [vmem:[%s8] sm:$0x3]
    %v324 = vlaneseq
    %v325 = vshrl.u32 %v324, 7
    %v326 = vsub.s32 0, %v325
    %v327 = vrot.slane %v322, %v326
    %v328 = vlaneseq
    %v329 = vshrl.u32 %v328, 7
    %v330 = vsub.s32 1, %v329
    %v331 = vrot.slane %v322, %v330
    %v350 = vunpack.c.l.b16 %v306
    %v351 = vunpack.c.h.b16 %v306
    %v352 = vunpack.c.l.b16 %v307
    %v353 = vunpack.c.h.b16 %v307
    %v354 = vunpack.c.l.b16 %v308
    %v355 = vunpack.c.h.b16 %v308
    %v356 = vunpack.c.l.b16 %v309
    %v357 = vunpack.c.h.b16 %v309
    %v358 = vunpack.c.l.b16 %v310
    %v359 = vunpack.c.h.b16 %v310
    %v360 = vunpack.c.l.b16 %v311
    %v361 = vunpack.c.h.b16 %v311
    %v362 = vunpack.c.l.b16 %v312
    %v363 = vunpack.c.h.b16 %v312
    %v364 = vunpack.c.l.b16 %v313
    %v365 = vunpack.c.h.b16 %v313
    %v366 = vunpack.c.l.b16 %v314
    %v367 = vunpack.c.h.b16 %v314
    %v368 = vunpack.c.l.b16 %v315
    %v369 = vunpack.c.h.b16 %v315
    %v370 = vunpack.c.l.b16 %v316
    %v371 = vunpack.c.h.b16 %v316
    %v372 = vunpack.c.l.b16 %v317
    %v373 = vunpack.c.h.b16 %v317
    %v374 = vunpack.c.l.b16 %v318
    %v375 = vunpack.c.h.b16 %v318
    %v376 = vunpack.c.l.b16 %v319
    %v377 = vunpack.c.h.b16 %v319
    %v378 = vunpack.c.l.b16 %v320
    %v379 = vunpack.c.h.b16 %v320
    %v380 = vunpack.c.l.b16 %v321
    %v381 = vunpack.c.h.b16 %v321
    %v382 = vpack.c.b16 %v352, %v350
    %v383 = vpack.c.b16 %v353, %v351
    %v384 = vpack.c.b16 %v356, %v354
    %v385 = vpack.c.b16 %v357, %v355
    %v386 = vpack.c.b16 %v360, %v358
    %v387 = vpack.c.b16 %v361, %v359
    %v388 = vpack.c.b16 %v364, %v362
    %v389 = vpack.c.b16 %v365, %v363
    %v390 = vpack.c.b16 %v368, %v366
    %v391 = vpack.c.b16 %v369, %v367
    %v392 = vpack.c.b16 %v372, %v370
    %v393 = vpack.c.b16 %v373, %v371
    %v394 = vpack.c.b16 %v376, %v374
    %v395 = vpack.c.b16 %v377, %v375
    %v396 = vpack.c.b16 %v380, %v378
    %v397 = vpack.c.b16 %v381, %v379
    %414 = vmatprep.subr.bf16.mxu0 %v383
    %415 = vmatpush1.bf16.msra.mxu0 %v382
    %416 = vmatprep.subr.bf16.mxu0 %v385
    %417 = vmatpush1.bf16.msra.mxu0 %v384
    %418 = vmatprep.subr.bf16.mxu0 %v387
    %419 = vmatpush1.bf16.msra.mxu0 %v386
    %420 = vmatprep.subr.bf16.mxu0 %v389
    %421 = vmatpush1.bf16.msra.mxu0 %v388
    %422 = vmatprep.subr.bf16.mxu0 %v391
    %423 = vmatpush1.bf16.msra.mxu0 %v390
    %424 = vmatprep.subr.bf16.mxu0 %v393
    %425 = vmatpush1.bf16.msra.mxu0 %v392
    %426 = vmatprep.subr.bf16.mxu0 %v395
    %427 = vmatpush1.bf16.msra.mxu0 %v394
    %428 = vmatprep.subr.bf16.mxu0 %v397
    %429 = vmatpush1.bf16.msra.mxu0 %v396
    %430 = vmatprep.subr.bf16.mxu0 0
    %431 = vmatpush1.bf16.msra.mxu0 0
    %432 = vmatprep.subr.bf16.mxu0 0
    %433 = vmatpush1.bf16.msra.mxu0 0
    %434 = vmatprep.subr.bf16.mxu0 0
    %435 = vmatpush1.bf16.msra.mxu0 0
    %436 = vmatprep.subr.bf16.mxu0 0
    %437 = vmatpush1.bf16.msra.mxu0 0
    %438 = vmatprep.subr.bf16.mxu0 0
    %439 = vmatpush1.bf16.msra.mxu0 0
    %440 = vmatprep.subr.bf16.mxu0 0
    %441 = vmatpush1.bf16.msra.mxu0 0
    %442 = vmatprep.subr.bf16.mxu0 0
    %443 = vmatpush1.bf16.msra.mxu0 0
    %444 = vmatprep.subr.bf16.mxu0 0
    %445 = vmatpush1.bf16.msra.mxu0 0
    %446 = vmatprep.mubr.bf16.mxu0 0
    %447 = vmatmul.mubr.bf16.gmra.mrb[0].mxu0 %v305
    %v448 = vpop.f32.mrb[0].mxu0
    %v449 = vadd.f32 %v327, %v448
    %v450 = vpop.f32.mrb[0].mxu0
    %v451 = vadd.f32 %v331, %v450
    %v452 = vpop.f32.mrb[0].mxu0
    %v453 = vadd.f32 %v327, %v452
    %v454 = vpop.f32.mrb[0].mxu0
    %v455 = vadd.f32 %v331, %v454
    %456 = vdwg.mxu0
    %v457 = vmax.f32 %v449, 0.0
    %v458 = vmax.f32 %v451, 0.0
    %v459 = vmax.f32 %v453, 0.0
    %v460 = vmax.f32 %v455, 0.0
    %v461 = vpack.c.bf16 %v459, %v457
    %v462 = vpack.c.bf16 %v460, %v458
    %v463 = vld [vmem:[#allocation7] sm:$0xf]
    %v464 = vld [vmem:[#allocation7 + $0x4] sm:$0xf]
    %v465 = vld [vmem:[#allocation7 + $0x8] sm:$0xf]
    %v466 = vld [vmem:[#allocation7 + $0xc] sm:$0xf]
    %v467 = vld [vmem:[#allocation7 + $0x10] sm:$0xf]
    %v468 = vld [vmem:[#allocation7 + $0x14] sm:$0xf]
    %v469 = vld [vmem:[#allocation7 + $0x18] sm:$0xf]
    %v470 = vld [vmem:[#allocation7 + $0x1c] sm:$0xf]
    %v471 = vld [vmem:[#allocation7 + $0x20] sm:$0xf]
    %v472 = vld [vmem:[#allocation7 + $0x24] sm:$0xf]
    %v473 = vld [vmem:[#allocation7 + $0x28] sm:$0xf]
    %v474 = vld [vmem:[#allocation7 + $0x2c] sm:$0xf]
    %v475 = vld [vmem:[#allocation7 + $0x30] sm:$0xf]
    %v476 = vld [vmem:[#allocation7 + $0x34] sm:$0xf]
    %v477 = vld [vmem:[#allocation7 + $0x38] sm:$0xf]
    %v478 = vld [vmem:[#allocation7 + $0x3c] sm:$0xf]
    %v479 = vld [vmem:[#allocation7 + $0x40] sm:$0xf]
    %v480 = vld [vmem:[#allocation7 + $0x44] sm:$0xf]
    %v481 = vld [vmem:[#allocation7 + $0x48] sm:$0xf]
    %v482 = vld [vmem:[#allocation7 + $0x4c] sm:$0xf]
    %v483 = vld [vmem:[#allocation7 + $0x50] sm:$0xf]
    %v484 = vld [vmem:[#allocation7 + $0x54] sm:$0xf]
    %v485 = vld [vmem:[#allocation7 + $0x58] sm:$0xf]
    %v486 = vld [vmem:[#allocation7 + $0x5c] sm:$0xf]
    %v487 = vld [vmem:[#allocation7 + $0x60] sm:$0xf]
    %v488 = vld [vmem:[#allocation7 + $0x64] sm:$0xf]
    %v489 = vld [vmem:[#allocation7 + $0x68] sm:$0xf]
    %v490 = vld [vmem:[#allocation7 + $0x6c] sm:$0xf]
    %v491 = vld [vmem:[#allocation7 + $0x70] sm:$0xf]
    %v492 = vld [vmem:[#allocation7 + $0x74] sm:$0xf]
    %v493 = vld [vmem:[#allocation7 + $0x78] sm:$0xf]
    %v494 = vld [vmem:[#allocation7 + $0x7c] sm:$0xf]
    %v495 = vld [vmem:[%s10] sm:$0x1]
    %v497 = vlaneseq
    %v498 = vshrl.u32 %v497, 7
    %v499 = vsub.s32 0, %v498
    %v500 = vrot.slane %v495, %v499
    %v534 = vunpack.c.l.b16 %v463
    %v535 = vunpack.c.l.b16 %v464
    %v536 = vunpack.c.l.b16 %v465
    %v537 = vunpack.c.l.b16 %v466
    %v538 = vunpack.c.l.b16 %v467
    %v539 = vunpack.c.l.b16 %v468
    %v540 = vunpack.c.l.b16 %v469
    %v541 = vunpack.c.l.b16 %v470
    %v542 = vunpack.c.l.b16 %v471
    %v543 = vunpack.c.l.b16 %v472
    %v544 = vunpack.c.l.b16 %v473
    %v545 = vunpack.c.l.b16 %v474
    %v546 = vunpack.c.l.b16 %v475
    %v547 = vunpack.c.l.b16 %v476
    %v548 = vunpack.c.l.b16 %v477
    %v549 = vunpack.c.l.b16 %v478
    %v550 = vunpack.c.l.b16 %v479
    %v551 = vunpack.c.l.b16 %v480
    %v552 = vunpack.c.l.b16 %v481
    %v553 = vunpack.c.l.b16 %v482
    %v554 = vunpack.c.l.b16 %v483
    %v555 = vunpack.c.l.b16 %v484
    %v556 = vunpack.c.l.b16 %v485
    %v557 = vunpack.c.l.b16 %v486
    %v558 = vunpack.c.l.b16 %v487
    %v559 = vunpack.c.l.b16 %v488
    %v560 = vunpack.c.l.b16 %v489
    %v561 = vunpack.c.l.b16 %v490
    %v562 = vunpack.c.l.b16 %v491
    %v563 = vunpack.c.l.b16 %v492
    %v564 = vunpack.c.l.b16 %v493
    %v565 = vunpack.c.l.b16 %v494
    %v566 = vpack.c.b16 %v535, %v534
    %v567 = vpack.c.b16 %v537, %v536
    %v568 = vpack.c.b16 %v539, %v538
    %v569 = vpack.c.b16 %v541, %v540
    %v570 = vpack.c.b16 %v543, %v542
    %v571 = vpack.c.b16 %v545, %v544
    %v572 = vpack.c.b16 %v547, %v546
    %v573 = vpack.c.b16 %v549, %v548
    %v574 = vpack.c.b16 %v551, %v550
    %v575 = vpack.c.b16 %v553, %v552
    %v576 = vpack.c.b16 %v555, %v554
    %v577 = vpack.c.b16 %v557, %v556
    %v578 = vpack.c.b16 %v559, %v558
    %v579 = vpack.c.b16 %v561, %v560
    %v580 = vpack.c.b16 %v563, %v562
    %v581 = vpack.c.b16 %v565, %v564
    %598 = vmatprep.subr.bf16.mxu0 0
    %599 = vmatpush1.bf16.msra.mxu0 %v566
    %600 = vmatprep.subr.bf16.mxu0 0
    %601 = vmatpush1.bf16.msra.mxu0 %v567
    %602 = vmatprep.subr.bf16.mxu0 0
    %603 = vmatpush1.bf16.msra.mxu0 %v568
    %604 = vmatprep.subr.bf16.mxu0 0
    %605 = vmatpush1.bf16.msra.mxu0 %v569
    %606 = vmatprep.subr.bf16.mxu0 0
    %607 = vmatpush1.bf16.msra.mxu0 %v570
    %608 = vmatprep.subr.bf16.mxu0 0
    %609 = vmatpush1.bf16.msra.mxu0 %v571
    %610 = vmatprep.subr.bf16.mxu0 0
    %611 = vmatpush1.bf16.msra.mxu0 %v572
    %612 = vmatprep.subr.bf16.mxu0 0
    %613 = vmatpush1.bf16.msra.mxu0 %v573
    %614 = vmatprep.subr.bf16.mxu0 0
    %615 = vmatpush1.bf16.msra.mxu0 %v574
    %616 = vmatprep.subr.bf16.mxu0 0
    %617 = vmatpush1.bf16.msra.mxu0 %v575
    %618 = vmatprep.subr.bf16.mxu0 0
    %619 = vmatpush1.bf16.msra.mxu0 %v576
    %620 = vmatprep.subr.bf16.mxu0 0
    %621 = vmatpush1.bf16.msra.mxu0 %v577
    %622 = vmatprep.subr.bf16.mxu0 0
    %623 = vmatpush1.bf16.msra.mxu0 %v578
    %624 = vmatprep.subr.bf16.mxu0 0
    %625 = vmatpush1.bf16.msra.mxu0 %v579
    %626 = vmatprep.subr.bf16.mxu0 0
    %627 = vmatpush1.bf16.msra.mxu0 %v580
    %628 = vmatprep.subr.bf16.mxu0 0
    %629 = vmatpush1.bf16.msra.mxu0 %v581
    %630 = vmatprep.mubr.bf16.mxu0 %v462
    %631 = vmatmul.mubr.bf16.gmra.mrb[0].mxu0 %v461
    %v632 = vpop.f32.mrb[0].mxu0
    %v633 = vadd.f32 %v500, %v632
    %v634 = vpop.f32.mrb[0].mxu0
    %v635 = vpop.f32.mrb[0].mxu0
    %v636 = vadd.f32 %v500, %v635
    %v637 = vpop.f32.mrb[0].mxu0
    %638 = vdwg.mxu0
    %v639 = vpack.c.bf16 %v636, %v633
    %v641 = vunpack.c.l.b16 %v639
    %v642 = vunpack.c.h.b16 %v639
    %v643 = vpack.c.b16 %v641, %v641
    %v644 = vpack.c.b16 %v642, %v642
    %647 = vst [vmem:[#allocation8] sm:$0xf] %v643
    %648 = vst [vmem:[#allocation8 + $0x4] sm:$0xf] %v644
    // Predicated region
    $region58: #{tpu_custom_call.1} parent=1 // pred_check
      _
    $region59: #{tpu_custom_call.1} parent=1 // pred_check_branch
      %650 = sbr.rel (0) target = $region61
    $region60: #{tpu_custom_call.1} parent=1 // pred_region
      %s652 = ssub.s32 128, 128
      %653 = vsyncadd [#allocation4], %s652
      %s654 = sshll.u32 [#allocation8], 4
      %s655 = int_to_ptr.vmem [resolvable:$true] %s654
      %660 = dma.vmem_to_hbm [thread:$0]  %s655, 128, %s11, [#allocation4], 64, 64, 4
    $region61: #{tpu_custom_call.1} parent=1 // pred_fallthru
      _
    // Predicated region
    $region62: #{tpu_custom_call.1} parent=1 // pred_check
      _
    $region63: #{tpu_custom_call.1} parent=1 // pred_check_branch
      %662 = sbr.rel (0) target = $region65
    $region64: #{tpu_custom_call.1} parent=1 // pred_region
      %663 = dma.done [#allocation4], 128
    $region65: #{tpu_custom_call.1} parent=1 // pred_fallthru
      _
    %664 = vsyncpa [#allocation3], 1
    %665 = vsyncpa [#allocation6], 1
    %666 = vsyncpa [#allocation4], 1

</llo_original>
